<compile_context>
chip_gen: v7x
topology: tpu7x:2x2x1
jax: 0.10.0
libtpu: 0.0.40
codegen_flags: <defaults>
</compile_context>

<pallas_src>
import math
from functools import partial

import jax
import jax.numpy as jnp
from jax import lax
from jax.experimental import pallas as pl
from jax.experimental.pallas import tpu as pltpu


# ------------------------------ helpers -------------------------------------

def _layer_norm(v, g, b, eps):
    mu = jnp.mean(v, axis=-1, keepdims=True)
    var = jnp.mean((v - mu) ** 2, axis=-1, keepdims=True)
    return (v - mu) * lax.rsqrt(var + eps) * g + b


# ---------------- fused attention + residual + LayerNorm kernel -------------

def _att_block_kernel(x_ref, res_ref, bias_ref, wqkv_ref, bqkv_ref,
                      wout_ref, bout_ref, g0_ref, b0_ref, g1_ref, b1_ref,
                      xo_ref, ro_ref, *, n_heads, scale, res_scale, eps):
    L, D = x_ref.shape[1], x_ref.shape[2]
    Dh = D // n_heads

    x = x_ref[0].astype(jnp.float32)                              # (L, D)
    res = res_ref[0].astype(jnp.float32)                          # (L, D)

    # QKV projection (stays in VMEM, never touches HBM).
    qkv = jnp.dot(x, wqkv_ref[...].astype(jnp.float32),
                  preferred_element_type=jnp.float32)
    qkv = qkv + bqkv_ref[...].astype(jnp.float32)                 # (L, 3D)

    # Per-head attention, with the output projection folded in:
    #   x_att = sum_h o_h @ W_out[h*Dh:(h+1)*Dh, :]  (exactly o @ W_out).
    x_att = jnp.zeros((L, D), jnp.float32)
    for h in range(n_heads):                                      # static unroll
        qh = qkv[:, h * Dh:(h + 1) * Dh]                          # (L, Dh)
        kh = qkv[:, D + h * Dh: D + (h + 1) * Dh]                 # (L, Dh)
        vh = qkv[:, 2 * D + h * Dh: 2 * D + (h + 1) * Dh]         # (L, Dh)

        # contract last dims directly -> no explicit transpose of k
        s = lax.dot_general(qh, kh, (((1,), (1,)), ((), ())),
                            preferred_element_type=jnp.float32) * scale
        s = s + bias_ref[0, h].astype(jnp.float32)                # (L, L)

        m = jnp.max(s, axis=-1, keepdims=True)
        p = jnp.exp(s - m)
        denom = jnp.sum(p, axis=-1, keepdims=True)
        r = pl.reciprocal(denom, approx=True)                     # EUP slot
        r = r * (2.0 - denom * r)                                 # one NR step -> ~exact
        oh = jnp.dot(p * r, vh, preferred_element_type=jnp.float32)   # (L, Dh)

        x_att = x_att + jnp.dot(
            oh, wout_ref[h * Dh:(h + 1) * Dh, :].astype(jnp.float32),
            preferred_element_type=jnp.float32)
    x_att = x_att + bout_ref[...].astype(jnp.float32)             # (L, D)

    # res = res + 0.1 * att ; x = LN0(x + att) + LN1(res)
    res_new = res + res_scale * x_att
    x_new = (_layer_norm(x + x_att,
                         g0_ref[...].astype(jnp.float32),
                         b0_ref[...].astype(jnp.float32), eps) +
             _layer_norm(res_new,
                         g1_ref[...].astype(jnp.float32),
                         b1_ref[...].astype(jnp.float32), eps))

    xo_ref[0] = x_new.astype(xo_ref.dtype)
    ro_ref[0] = res_new.astype(ro_ref.dtype)


def attention_resnorm(x, res, bias, params, n_heads, *, res_scale, eps):
    B, L, D = x.shape
    N = n_heads
    row3 = pl.BlockSpec((1, L, D), lambda b: (b, 0, 0))

    def full(shape):
        return pl.BlockSpec(shape, lambda b: (0,) * len(shape))

    return pl.pallas_call(
        partial(_att_block_kernel, n_heads=n_heads,
                scale=1.0 / math.sqrt(D // n_heads),
                res_scale=res_scale, eps=eps),
        out_shape=(jax.ShapeDtypeStruct((B, L, D), x.dtype),
                   jax.ShapeDtypeStruct((B, L, D), x.dtype)),
        grid=(B,),
        in_specs=[row3, row3,
                  pl.BlockSpec((1, N, L, L), lambda b: (b, 0, 0, 0)),
                  full((D, 3 * D)), full((1, 3 * D)),
                  full((D, D)), full((1, D)),
                  full((1, D)), full((1, D)), full((1, D)), full((1, D))],
        out_specs=(row3, row3),
        compiler_params=pltpu.CompilerParams(dimension_semantics=("parallel",)),
    )(x, res, bias,
      params["w_qkv"], params["b_qkv"].reshape(1, 3 * D),
      params["w_out"], params["b_out"].reshape(1, D),
      params["norm_g"][0].reshape(1, D), params["norm_b"][0].reshape(1, D),
      params["norm_g"][1].reshape(1, D), params["norm_b"][1].reshape(1, D))


# ------------------ fused FFN + residual + LayerNorm kernel ------------------

def _ffn_block_kernel(x_ref, res_ref, w1_ref, b1_ref, w2_ref, b2_ref,
                      g2_ref, bb2_ref, g3_ref, bb3_ref, xo_ref, ro_ref,
                      *, res_scale, eps):
    x = x_ref[...].astype(jnp.float32)
    res = res_ref[...].astype(jnp.float32)

    h = jnp.dot(x, w1_ref[...].astype(jnp.float32),
                preferred_element_type=jnp.float32) + b1_ref[...].astype(jnp.float32)
    h = jax.nn.gelu(h, approximate=False)            # PyTorch nn.GELU() is exact (erf)
    x_ffn = jnp.dot(h, w2_ref[...].astype(jnp.float32),
                    preferred_element_type=jnp.float32) + b2_ref[...].astype(jnp.float32)

    # res = res + 0.1 * ffn ; x = LN2(x + ffn) + LN3(res)
    res_new = res + res_scale * x_ffn
    x_new = (_layer_norm(x + x_ffn,
                         g2_ref[...].astype(jnp.float32),
                         bb2_ref[...].astype(jnp.float32), eps) +
             _layer_norm(res_new,
                         g3_ref[...].astype(jnp.float32),
                         bb3_ref[...].astype(jnp.float32), eps))

    xo_ref[...] = x_new.astype(xo_ref.dtype)
    ro_ref[...] = res_new.astype(ro_ref.dtype)


def ffn_resnorm(x2d, res2d, params, *, res_scale, eps, tm=256):
    M, D = x2d.shape
    Dffn = params["w_ffn1"].shape[1]
    tm = min(tm, M)                                   # big row tile, capped at M
    grid = (pl.cdiv(M, tm),)                          # tail-safe (OOB writes dropped)
    row = pl.BlockSpec((tm, D), lambda i: (i, 0))

    def full(shape):
        return pl.BlockSpec(shape, lambda i: (0,) * len(shape))

    return pl.pallas_call(
        partial(_ffn_block_kernel, res_scale=res_scale, eps=eps),
        out_shape=(jax.ShapeDtypeStruct((M, D), x2d.dtype),
                   jax.ShapeDtypeStruct((M, D), x2d.dtype)),
        grid=grid,
        in_specs=[row, row,
                  full((D, Dffn)), full((1, Dffn)),
                  full((Dffn, D)), full((1, D)),
                  full((1, D)), full((1, D)), full((1, D)), full((1, D))],
        out_specs=(row, row),
        compiler_params=pltpu.CompilerParams(dimension_semantics=("parallel",)),
    )(x2d, res2d,
      params["w_ffn1"], params["b_ffn1"].reshape(1, Dffn),
      params["w_ffn2"], params["b_ffn2"].reshape(1, D),
      params["norm_g"][2].reshape(1, D), params["norm_b"][2].reshape(1, D),
      params["norm_g"][3].reshape(1, D), params["norm_b"][3].reshape(1, D))


# ------------------------------ EncoderLayer ---------------------------------

def init_params(key, d_model, d_ffn, dtype=jnp.float32):
    ks = jax.random.split(key, 8)
    s = 0.05
    return {
        "w_qkv": jax.random.normal(ks[0], (d_model, 3 * d_model), dtype) * s,
        "b_qkv": jax.random.normal(ks[1], (3 * d_model,), dtype) * s,
        "w_out": jax.random.normal(ks[2], (d_model, d_model), dtype) * s,
        "b_out": jax.random.normal(ks[3], (d_model,), dtype) * s,
        "w_ffn1": jax.random.normal(ks[4], (d_model, d_ffn), dtype) * s,
        "b_ffn1": jax.random.normal(ks[5], (d_ffn,), dtype) * s,
        "w_ffn2": jax.random.normal(ks[6], (d_ffn, d_model), dtype) * s,
        "b_ffn2": jax.random.normal(ks[7], (d_model,), dtype) * s,
        "norm_g": [jnp.full((d_model,), 1.0 + 0.01 * i, dtype) for i in range(4)],
        "norm_b": [jnp.full((d_model,), 0.01 * i, dtype) for i in range(4)],
    }


def encoder_layer_forward(x, res, bias, params, n_heads, res_scale=0.1, eps=1e-5):
    B, L, D = x.shape
    # fused kernel 1: MHA + out-proj + residual + LN0/LN1, one grid step per batch
    x1, res1 = attention_resnorm(x, res, bias, params, n_heads,
                                 res_scale=res_scale, eps=eps)
    # fused kernel 2: FFN + residual + LN2/LN3, row-tiled over M = B*L
    x2d, res2d = ffn_resnorm(x1.reshape(B * L, D), res1.reshape(B * L, D),
                             params, res_scale=res_scale, eps=eps)
    # TODO(synk): GRU branch (use_gru=1) not implemented; bidirectional recurrence
    # has no clean tile-parallel Pallas mapping at these shapes.
    return x2d.reshape(B, L, D), res2d.reshape(B, L, D)


# ----------------------------- plain-JAX reference ---------------------------

def encoder_layer_ref(x, res, bias, params, n_heads, res_scale=0.1, eps=1e-5):
    B, L, D = x.shape
    Dh = D // n_heads

    def ln(v, g, b):
        mu = jnp.mean(v, -1, keepdims=True)
        var = jnp.mean((v - mu) ** 2, -1, keepdims=True)
        return (v - mu) / jnp.sqrt(var + eps) * g + b

    qkv = x @ params["w_qkv"] + params["b_qkv"]
    qkv = qkv.reshape(B, L, 3, n_heads, Dh)
    q = qkv[:, :, 0].transpose(0, 2, 1, 3)
    k = qkv[:, :, 1].transpose(0, 2, 1, 3)
    v = qkv[:, :, 2].transpose(0, 2, 1, 3)
    s = jnp.einsum("bnld,bnmd->bnlm", q, k) / math.sqrt(Dh) + bias
    p = jax.nn.softmax(s, -1)
    o = jnp.einsum("bnlm,bnmd->bnld", p, v).transpose(0, 2, 1, 3).reshape(B, L, D)
    x_att = o @ params["w_out"] + params["b_out"]
    res = res + x_att * res_scale
    x = ln(x + x_att, params["norm_g"][0], params["norm_b"][0]) + \
        ln(res, params["norm_g"][1], params["norm_b"][1])
    h = jax.nn.gelu(x @ params["w_ffn1"] + params["b_ffn1"], approximate=False)
    x_ffn = h @ params["w_ffn2"] + params["b_ffn2"]
    res = res + x_ffn * res_scale
    x = ln(x + x_ffn, params["norm_g"][2], params["norm_b"][2]) + \
        ln(res, params["norm_g"][3], params["norm_b"][3])
    return x, res


# ----------------------------------- main ------------------------------------

if __name__ == "__main__":
    # EncoderLayer(d_heads=8, n_heads=4, ffn_multi=2, qkv_bias=True, ffn_bias=True,
    #              att_fn='sdpa', use_gru=0), eval mode.
    B, L = 2, 8
    d_heads, n_heads = 8, 4
    d_model = d_heads * n_heads          # 32
    d_ffn = d_model * 2                  # 64

    key = jax.random.PRNGKey(0)
    k_x, k_res, k_bias, k_p = jax.random.split(key, 4)
    x = jax.random.normal(k_x, (B, L, d_model), jnp.float32)
    res = jax.random.normal(k_res, (B, L, d_model), jnp.float32)
    bias = jax.random.normal(k_bias, (B, n_heads, L, L), jnp.float32) * 0.1
    params = init_params(k_p, d_model, d_ffn)

    x_out, res_out = encoder_layer_forward(x, res, bias, params, n_heads)
    jax.block_until_ready((x_out, res_out))

    x_ref, res_ref = encoder_layer_ref(x, res, bias, params, n_heads)
    # slightly relaxed tolerance: softmax denom uses EUP approx reciprocal + one NR step
    assert jnp.allclose(x_out, x_ref, atol=1e-3, rtol=1e-3), "x mismatch"
    assert jnp.allclose(res_out, res_ref, atol=1e-3, rtol=1e-3), "res mismatch"

    print("KERNEL_OK")
</pallas_src>

<mosaic_0001>
module attributes {stable_mosaic.version = 11 : i64} {
  func.func @_att_block_kernel(%arg0: i32, %arg1: memref<1x8x32xf32, #tpu.memory_space<vmem>>, %arg2: memref<1x8x32xf32, #tpu.memory_space<vmem>>, %arg3: memref<1x4x8x8xf32, #tpu.memory_space<vmem>>, %arg4: memref<32x96xf32, #tpu.memory_space<vmem>>, %arg5: memref<1x96xf32, #tpu.memory_space<vmem>>, %arg6: memref<32x32xf32, #tpu.memory_space<vmem>>, %arg7: memref<1x32xf32, #tpu.memory_space<vmem>>, %arg8: memref<1x32xf32, #tpu.memory_space<vmem>>, %arg9: memref<1x32xf32, #tpu.memory_space<vmem>>, %arg10: memref<1x32xf32, #tpu.memory_space<vmem>>, %arg11: memref<1x32xf32, #tpu.memory_space<vmem>>, %arg12: memref<1x8x32xf32, #tpu.memory_space<vmem>>, %arg13: memref<1x8x32xf32, #tpu.memory_space<vmem>>) attributes {dimension_semantics = [#tpu.dimension_semantics<parallel>], iteration_bounds = array<i64: 2>, scalar_prefetch = 0 : i64, scratch_operands = 0 : i64, tpu.core_type = #tpu.core_type<tc>, window_params = [{transform_indices = @transform_0, window_bounds = array<i64: 1, 8, 32>}, {transform_indices = @transform_1, window_bounds = array<i64: 1, 8, 32>}, {transform_indices = @transform_2, window_bounds = array<i64: 1, 4, 8, 8>}, {pipeline_mode = #tpu.pipeline_mode<synchronous>, transform_indices = @transform_3, window_bounds = array<i64: 32, 96>}, {pipeline_mode = #tpu.pipeline_mode<synchronous>, transform_indices = @transform_4, window_bounds = array<i64: 1, 96>}, {pipeline_mode = #tpu.pipeline_mode<synchronous>, transform_indices = @transform_5, window_bounds = array<i64: 32, 32>}, {pipeline_mode = #tpu.pipeline_mode<synchronous>, transform_indices = @transform_6, window_bounds = array<i64: 1, 32>}, {pipeline_mode = #tpu.pipeline_mode<synchronous>, transform_indices = @transform_7, window_bounds = array<i64: 1, 32>}, {pipeline_mode = #tpu.pipeline_mode<synchronous>, transform_indices = @transform_8, window_bounds = array<i64: 1, 32>}, {pipeline_mode = #tpu.pipeline_mode<synchronous>, transform_indices = @transform_9, window_bounds = array<i64: 1, 32>}, {pipeline_mode = #tpu.pipeline_mode<synchronous>, transform_indices = @transform_10, window_bounds = array<i64: 1, 32>}, {transform_indices = @transform_11, window_bounds = array<i64: 1, 8, 32>}, {transform_indices = @transform_12, window_bounds = array<i64: 1, 8, 32>}]} {
    %c0 = arith.constant 0 : index
    %c0_0 = arith.constant 0 : index
    %c0_1 = arith.constant 0 : index
    %0 = vector.load %arg1[%c0, %c0_0, %c0_1] : memref<1x8x32xf32, #tpu.memory_space<vmem>>, vector<1x8x32xf32>
    %1 = vector.shape_cast %0 : vector<1x8x32xf32> to vector<8x32xf32>
    %c0_2 = arith.constant 0 : index
    %c0_3 = arith.constant 0 : index
    %c0_4 = arith.constant 0 : index
    %2 = vector.load %arg2[%c0_2, %c0_3, %c0_4] : memref<1x8x32xf32, #tpu.memory_space<vmem>>, vector<1x8x32xf32>
    %3 = vector.shape_cast %2 : vector<1x8x32xf32> to vector<8x32xf32>
    %c0_5 = arith.constant 0 : index
    %c0_6 = arith.constant 0 : index
    %4 = vector.load %arg4[%c0_5, %c0_6] : memref<32x96xf32, #tpu.memory_space<vmem>>, vector<32x96xf32>
    %cst = arith.constant dense<0.000000e+00> : vector<8x96xf32>
    %5 = tpu.matmul %1, %4, %cst {dimension_numbers = #tpu.dot_dimension_numbers<[1], [0], [0], [1], [0, 0, 1, 1], [], []>} : vector<8x32xf32>, vector<32x96xf32>, vector<8x96xf32> -> vector<8x96xf32>
    %c0_7 = arith.constant 0 : index
    %c0_8 = arith.constant 0 : index
    %6 = vector.load %arg5[%c0_7, %c0_8] : memref<1x96xf32, #tpu.memory_space<vmem>>, vector<1x96xf32>
    %7 = vector.broadcast %6 : vector<1x96xf32> to vector<8x96xf32>
    %8 = arith.addf %5, %7 : vector<8x96xf32>
    %cst_9 = arith.constant 0.000000e+00 : f32
    %9 = vector.broadcast %cst_9 : f32 to vector<8x32xf32>
    %10 = vector.extract_strided_slice %8 {offsets = [0, 0], sizes = [8, 8], strides = [1, 1]} : vector<8x96xf32> to vector<8x8xf32>
    %11 = vector.extract_strided_slice %8 {offsets = [0, 32], sizes = [8, 8], strides = [1, 1]} : vector<8x96xf32> to vector<8x8xf32>
    %12 = vector.extract_strided_slice %8 {offsets = [0, 64], sizes = [8, 8], strides = [1, 1]} : vector<8x96xf32> to vector<8x8xf32>
    %cst_10 = arith.constant dense<0.000000e+00> : vector<8x8xf32>
    %13 = tpu.matmul %10, %11, %cst_10 {dimension_numbers = #tpu.dot_dimension_numbers<[1], [1], [0], [0], [0, 0, 1, 0], [], []>} : vector<8x8xf32>, vector<8x8xf32>, vector<8x8xf32> -> vector<8x8xf32>
    %cst_11 = arith.constant 0.353553385 : f32
    %14 = vector.broadcast %cst_11 : f32 to vector<8x8xf32>
    %15 = arith.mulf %13, %14 : vector<8x8xf32>
    %c0_12 = arith.constant 0 : index
    %c0_13 = arith.constant 0 : index
    %c0_14 = arith.constant 0 : index
    %c0_15 = arith.constant 0 : index
    %16 = vector.load %arg3[%c0_12, %c0_13, %c0_14, %c0_15] : memref<1x4x8x8xf32, #tpu.memory_space<vmem>>, vector<1x1x8x8xf32>
    %17 = vector.shape_cast %16 : vector<1x1x8x8xf32> to vector<8x8xf32>
    %18 = arith.addf %15, %17 : vector<8x8xf32>
    %cst_16 = arith.constant dense<0xFF800000> : vector<8xf32>
    %19 = vector.multi_reduction <maximumf>, %18, %cst_16 [1] : vector<8x8xf32> to vector<8xf32>
    %20 = vector.shape_cast %19 : vector<8xf32> to vector<8x1xf32>
    %21 = vector.broadcast %20 : vector<8x1xf32> to vector<8x8xf32>
    %22 = arith.subf %18, %21 : vector<8x8xf32>
    %23 = math.exp %22 : vector<8x8xf32>
    %cst_17 = arith.constant dense<0.000000e+00> : vector<8xf32>
    %24 = vector.multi_reduction <add>, %23, %cst_17 [1] : vector<8x8xf32> to vector<8xf32>
    %25 = vector.shape_cast %24 : vector<8xf32> to vector<8x1xf32>
    %26 = tpu.reciprocal %25 {approx = true} : vector<8x1xf32> -> vector<8x1xf32>
    %27 = arith.mulf %25, %26 : vector<8x1xf32>
    %cst_18 = arith.constant 2.000000e+00 : f32
    %28 = vector.broadcast %cst_18 : f32 to vector<8x1xf32>
    %29 = arith.subf %28, %27 : vector<8x1xf32>
    %30 = arith.mulf %26, %29 : vector<8x1xf32>
    %31 = vector.broadcast %30 : vector<8x1xf32> to vector<8x8xf32>
    %32 = arith.mulf %23, %31 : vector<8x8xf32>
    %cst_19 = arith.constant dense<0.000000e+00> : vector<8x8xf32>
    %33 = tpu.matmul %32, %12, %cst_19 {dimension_numbers = #tpu.dot_dimension_numbers<[1], [0], [0], [1], [0, 0, 1, 1], [], []>} : vector<8x8xf32>, vector<8x8xf32>, vector<8x8xf32> -> vector<8x8xf32>
    %c0_20 = arith.constant 0 : index
    %c0_21 = arith.constant 0 : index
    %34 = vector.load %arg6[%c0_20, %c0_21] : memref<32x32xf32, #tpu.memory_space<vmem>>, vector<8x32xf32>
    %cst_22 = arith.constant dense<0.000000e+00> : vector<8x32xf32>
    %35 = tpu.matmul %33, %34, %cst_22 {dimension_numbers = #tpu.dot_dimension_numbers<[1], [0], [0], [1], [0, 0, 1, 1], [], []>} : vector<8x8xf32>, vector<8x32xf32>, vector<8x32xf32> -> vector<8x32xf32>
    %36 = arith.addf %9, %35 : vector<8x32xf32>
    %37 = vector.extract_strided_slice %8 {offsets = [0, 8], sizes = [8, 8], strides = [1, 1]} : vector<8x96xf32> to vector<8x8xf32>
    %38 = vector.extract_strided_slice %8 {offsets = [0, 40], sizes = [8, 8], strides = [1, 1]} : vector<8x96xf32> to vector<8x8xf32>
    %39 = vector.extract_strided_slice %8 {offsets = [0, 72], sizes = [8, 8], strides = [1, 1]} : vector<8x96xf32> to vector<8x8xf32>
    %cst_23 = arith.constant dense<0.000000e+00> : vector<8x8xf32>
    %40 = tpu.matmul %37, %38, %cst_23 {dimension_numbers = #tpu.dot_dimension_numbers<[1], [1], [0], [0], [0, 0, 1, 0], [], []>} : vector<8x8xf32>, vector<8x8xf32>, vector<8x8xf32> -> vector<8x8xf32>
    %cst_24 = arith.constant 0.353553385 : f32
    %41 = vector.broadcast %cst_24 : f32 to vector<8x8xf32>
    %42 = arith.mulf %40, %41 : vector<8x8xf32>
    %c0_25 = arith.constant 0 : index
    %c1 = arith.constant 1 : index
    %c0_26 = arith.constant 0 : index
    %c0_27 = arith.constant 0 : index
    %43 = vector.load %arg3[%c0_25, %c1, %c0_26, %c0_27] : memref<1x4x8x8xf32, #tpu.memory_space<vmem>>, vector<1x1x8x8xf32>
    %44 = vector.shape_cast %43 : vector<1x1x8x8xf32> to vector<8x8xf32>
    %45 = arith.addf %42, %44 : vector<8x8xf32>
    %cst_28 = arith.constant dense<0xFF800000> : vector<8xf32>
    %46 = vector.multi_reduction <maximumf>, %45, %cst_28 [1] : vector<8x8xf32> to vector<8xf32>
    %47 = vector.shape_cast %46 : vector<8xf32> to vector<8x1xf32>
    %48 = vector.broadcast %47 : vector<8x1xf32> to vector<8x8xf32>
    %49 = arith.subf %45, %48 : vector<8x8xf32>
    %50 = math.exp %49 : vector<8x8xf32>
    %cst_29 = arith.constant dense<0.000000e+00> : vector<8xf32>
    %51 = vector.multi_reduction <add>, %50, %cst_29 [1] : vector<8x8xf32> to vector<8xf32>
    %52 = vector.shape_cast %51 : vector<8xf32> to vector<8x1xf32>
    %53 = tpu.reciprocal %52 {approx = true} : vector<8x1xf32> -> vector<8x1xf32>
    %54 = arith.mulf %52, %53 : vector<8x1xf32>
    %cst_30 = arith.constant 2.000000e+00 : f32
    %55 = vector.broadcast %cst_30 : f32 to vector<8x1xf32>
    %56 = arith.subf %55, %54 : vector<8x1xf32>
    %57 = arith.mulf %53, %56 : vector<8x1xf32>
    %58 = vector.broadcast %57 : vector<8x1xf32> to vector<8x8xf32>
    %59 = arith.mulf %50, %58 : vector<8x8xf32>
    %cst_31 = arith.constant dense<0.000000e+00> : vector<8x8xf32>
    %60 = tpu.matmul %59, %39, %cst_31 {dimension_numbers = #tpu.dot_dimension_numbers<[1], [0], [0], [1], [0, 0, 1, 1], [], []>} : vector<8x8xf32>, vector<8x8xf32>, vector<8x8xf32> -> vector<8x8xf32>
    %c8 = arith.constant 8 : index
    %c0_32 = arith.constant 0 : index
    %61 = vector.load %arg6[%c8, %c0_32] : memref<32x32xf32, #tpu.memory_space<vmem>>, vector<8x32xf32>
    %cst_33 = arith.constant dense<0.000000e+00> : vector<8x32xf32>
    %62 = tpu.matmul %60, %61, %cst_33 {dimension_numbers = #tpu.dot_dimension_numbers<[1], [0], [0], [1], [0, 0, 1, 1], [], []>} : vector<8x8xf32>, vector<8x32xf32>, vector<8x32xf32> -> vector<8x32xf32>
    %63 = arith.addf %36, %62 : vector<8x32xf32>
    %64 = vector.extract_strided_slice %8 {offsets = [0, 16], sizes = [8, 8], strides = [1, 1]} : vector<8x96xf32> to vector<8x8xf32>
    %65 = vector.extract_strided_slice %8 {offsets = [0, 48], sizes = [8, 8], strides = [1, 1]} : vector<8x96xf32> to vector<8x8xf32>
    %66 = vector.extract_strided_slice %8 {offsets = [0, 80], sizes = [8, 8], strides = [1, 1]} : vector<8x96xf32> to vector<8x8xf32>
    %cst_34 = arith.constant dense<0.000000e+00> : vector<8x8xf32>
    %67 = tpu.matmul %64, %65, %cst_34 {dimension_numbers = #tpu.dot_dimension_numbers<[1], [1], [0], [0], [0, 0, 1, 0], [], []>} : vector<8x8xf32>, vector<8x8xf32>, vector<8x8xf32> -> vector<8x8xf32>
    %cst_35 = arith.constant 0.353553385 : f32
    %68 = vector.broadcast %cst_35 : f32 to vector<8x8xf32>
    %69 = arith.mulf %67, %68 : vector<8x8xf32>
    %c0_36 = arith.constant 0 : index
    %c2 = arith.constant 2 : index
    %c0_37 = arith.constant 0 : index
    %c0_38 = arith.constant 0 : index
    %70 = vector.load %arg3[%c0_36, %c2, %c0_37, %c0_38] : memref<1x4x8x8xf32, #tpu.memory_space<vmem>>, vector<1x1x8x8xf32>
    %71 = vector.shape_cast %70 : vector<1x1x8x8xf32> to vector<8x8xf32>
    %72 = arith.addf %69, %71 : vector<8x8xf32>
    %cst_39 = arith.constant dense<0xFF800000> : vector<8xf32>
    %73 = vector.multi_reduction <maximumf>, %72, %cst_39 [1] : vector<8x8xf32> to vector<8xf32>
    %74 = vector.shape_cast %73 : vector<8xf32> to vector<8x1xf32>
    %75 = vector.broadcast %74 : vector<8x1xf32> to vector<8x8xf32>
    %76 = arith.subf %72, %75 : vector<8x8xf32>
    %77 = math.exp %76 : vector<8x8xf32>
    %cst_40 = arith.constant dense<0.000000e+00> : vector<8xf32>
    %78 = vector.multi_reduction <add>, %77, %cst_40 [1] : vector<8x8xf32> to vector<8xf32>
    %79 = vector.shape_cast %78 : vector<8xf32> to vector<8x1xf32>
    %80 = tpu.reciprocal %79 {approx = true} : vector<8x1xf32> -> vector<8x1xf32>
    %81 = arith.mulf %79, %80 : vector<8x1xf32>
    %cst_41 = arith.constant 2.000000e+00 : f32
    %82 = vector.broadcast %cst_41 : f32 to vector<8x1xf32>
    %83 = arith.subf %82, %81 : vector<8x1xf32>
    %84 = arith.mulf %80, %83 : vector<8x1xf32>
    %85 = vector.broadcast %84 : vector<8x1xf32> to vector<8x8xf32>
    %86 = arith.mulf %77, %85 : vector<8x8xf32>
    %cst_42 = arith.constant dense<0.000000e+00> : vector<8x8xf32>
    %87 = tpu.matmul %86, %66, %cst_42 {dimension_numbers = #tpu.dot_dimension_numbers<[1], [0], [0], [1], [0, 0, 1, 1], [], []>} : vector<8x8xf32>, vector<8x8xf32>, vector<8x8xf32> -> vector<8x8xf32>
    %c16 = arith.constant 16 : index
    %c0_43 = arith.constant 0 : index
    %88 = vector.load %arg6[%c16, %c0_43] : memref<32x32xf32, #tpu.memory_space<vmem>>, vector<8x32xf32>
    %cst_44 = arith.constant dense<0.000000e+00> : vector<8x32xf32>
    %89 = tpu.matmul %87, %88, %cst_44 {dimension_numbers = #tpu.dot_dimension_numbers<[1], [0], [0], [1], [0, 0, 1, 1], [], []>} : vector<8x8xf32>, vector<8x32xf32>, vector<8x32xf32> -> vector<8x32xf32>
    %90 = arith.addf %63, %89 : vector<8x32xf32>
    %91 = vector.extract_strided_slice %8 {offsets = [0, 24], sizes = [8, 8], strides = [1, 1]} : vector<8x96xf32> to vector<8x8xf32>
    %92 = vector.extract_strided_slice %8 {offsets = [0, 56], sizes = [8, 8], strides = [1, 1]} : vector<8x96xf32> to vector<8x8xf32>
    %93 = vector.extract_strided_slice %8 {offsets = [0, 88], sizes = [8, 8], strides = [1, 1]} : vector<8x96xf32> to vector<8x8xf32>
    %cst_45 = arith.constant dense<0.000000e+00> : vector<8x8xf32>
    %94 = tpu.matmul %91, %92, %cst_45 {dimension_numbers = #tpu.dot_dimension_numbers<[1], [1], [0], [0], [0, 0, 1, 0], [], []>} : vector<8x8xf32>, vector<8x8xf32>, vector<8x8xf32> -> vector<8x8xf32>
    %cst_46 = arith.constant 0.353553385 : f32
    %95 = vector.broadcast %cst_46 : f32 to vector<8x8xf32>
    %96 = arith.mulf %94, %95 : vector<8x8xf32>
    %c0_47 = arith.constant 0 : index
    %c3 = arith.constant 3 : index
    %c0_48 = arith.constant 0 : index
    %c0_49 = arith.constant 0 : index
    %97 = vector.load %arg3[%c0_47, %c3, %c0_48, %c0_49] : memref<1x4x8x8xf32, #tpu.memory_space<vmem>>, vector<1x1x8x8xf32>
    %98 = vector.shape_cast %97 : vector<1x1x8x8xf32> to vector<8x8xf32>
    %99 = arith.addf %96, %98 : vector<8x8xf32>
    %cst_50 = arith.constant dense<0xFF800000> : vector<8xf32>
    %100 = vector.multi_reduction <maximumf>, %99, %cst_50 [1] : vector<8x8xf32> to vector<8xf32>
    %101 = vector.shape_cast %100 : vector<8xf32> to vector<8x1xf32>
    %102 = vector.broadcast %101 : vector<8x1xf32> to vector<8x8xf32>
    %103 = arith.subf %99, %102 : vector<8x8xf32>
    %104 = math.exp %103 : vector<8x8xf32>
    %cst_51 = arith.constant dense<0.000000e+00> : vector<8xf32>
    %105 = vector.multi_reduction <add>, %104, %cst_51 [1] : vector<8x8xf32> to vector<8xf32>
    %106 = vector.shape_cast %105 : vector<8xf32> to vector<8x1xf32>
    %107 = tpu.reciprocal %106 {approx = true} : vector<8x1xf32> -> vector<8x1xf32>
    %108 = arith.mulf %106, %107 : vector<8x1xf32>
    %cst_52 = arith.constant 2.000000e+00 : f32
    %109 = vector.broadcast %cst_52 : f32 to vector<8x1xf32>
    %110 = arith.subf %109, %108 : vector<8x1xf32>
    %111 = arith.mulf %107, %110 : vector<8x1xf32>
    %112 = vector.broadcast %111 : vector<8x1xf32> to vector<8x8xf32>
    %113 = arith.mulf %104, %112 : vector<8x8xf32>
    %cst_53 = arith.constant dense<0.000000e+00> : vector<8x8xf32>
    %114 = tpu.matmul %113, %93, %cst_53 {dimension_numbers = #tpu.dot_dimension_numbers<[1], [0], [0], [1], [0, 0, 1, 1], [], []>} : vector<8x8xf32>, vector<8x8xf32>, vector<8x8xf32> -> vector<8x8xf32>
    %c24 = arith.constant 24 : index
    %c0_54 = arith.constant 0 : index
    %115 = vector.load %arg6[%c24, %c0_54] : memref<32x32xf32, #tpu.memory_space<vmem>>, vector<8x32xf32>
    %cst_55 = arith.constant dense<0.000000e+00> : vector<8x32xf32>
    %116 = tpu.matmul %114, %115, %cst_55 {dimension_numbers = #tpu.dot_dimension_numbers<[1], [0], [0], [1], [0, 0, 1, 1], [], []>} : vector<8x8xf32>, vector<8x32xf32>, vector<8x32xf32> -> vector<8x32xf32>
    %117 = arith.addf %90, %116 : vector<8x32xf32>
    %c0_56 = arith.constant 0 : index
    %c0_57 = arith.constant 0 : index
    %118 = vector.load %arg7[%c0_56, %c0_57] : memref<1x32xf32, #tpu.memory_space<vmem>>, vector<1x32xf32>
    %119 = vector.broadcast %118 : vector<1x32xf32> to vector<8x32xf32>
    %120 = arith.addf %117, %119 : vector<8x32xf32>
    %cst_58 = arith.constant 1.000000e-01 : f32
    %121 = vector.broadcast %cst_58 : f32 to vector<8x32xf32>
    %122 = arith.mulf %121, %120 : vector<8x32xf32>
    %123 = arith.addf %3, %122 : vector<8x32xf32>
    %124 = arith.addf %1, %120 : vector<8x32xf32>
    %c0_59 = arith.constant 0 : index
    %c0_60 = arith.constant 0 : index
    %125 = vector.load %arg8[%c0_59, %c0_60] : memref<1x32xf32, #tpu.memory_space<vmem>>, vector<1x32xf32>
    %c0_61 = arith.constant 0 : index
    %c0_62 = arith.constant 0 : index
    %126 = vector.load %arg9[%c0_61, %c0_62] : memref<1x32xf32, #tpu.memory_space<vmem>>, vector<1x32xf32>
    %cst_63 = arith.constant dense<0.000000e+00> : vector<8xf32>
    %127 = vector.multi_reduction <add>, %124, %cst_63 [1] : vector<8x32xf32> to vector<8xf32>
    %128 = vector.shape_cast %127 : vector<8xf32> to vector<8x1xf32>
    %cst_64 = arith.constant 3.200000e+01 : f32
    %129 = vector.broadcast %cst_64 : f32 to vector<8x1xf32>
    %130 = arith.divf %128, %129 : vector<8x1xf32>
    %131 = vector.broadcast %130 : vector<8x1xf32> to vector<8x32xf32>
    %132 = arith.subf %124, %131 : vector<8x32xf32>
    %133 = arith.mulf %132, %132 : vector<8x32xf32>
    %cst_65 = arith.constant dense<0.000000e+00> : vector<8xf32>
    %134 = vector.multi_reduction <add>, %133, %cst_65 [1] : vector<8x32xf32> to vector<8xf32>
    %135 = vector.shape_cast %134 : vector<8xf32> to vector<8x1xf32>
    %cst_66 = arith.constant 3.200000e+01 : f32
    %136 = vector.broadcast %cst_66 : f32 to vector<8x1xf32>
    %137 = arith.divf %135, %136 : vector<8x1xf32>
    %138 = vector.broadcast %130 : vector<8x1xf32> to vector<8x32xf32>
    %139 = arith.subf %124, %138 : vector<8x32xf32>
    %cst_67 = arith.constant 9.99999974E-6 : f32
    %140 = vector.broadcast %cst_67 : f32 to vector<8x1xf32>
    %141 = arith.addf %137, %140 : vector<8x1xf32>
    %142 = math.rsqrt %141 : vector<8x1xf32>
    %143 = vector.broadcast %142 : vector<8x1xf32> to vector<8x32xf32>
    %144 = arith.mulf %139, %143 : vector<8x32xf32>
    %145 = vector.broadcast %125 : vector<1x32xf32> to vector<8x32xf32>
    %146 = arith.mulf %144, %145 : vector<8x32xf32>
    %147 = vector.broadcast %126 : vector<1x32xf32> to vector<8x32xf32>
    %148 = arith.addf %146, %147 : vector<8x32xf32>
    %c0_68 = arith.constant 0 : index
    %c0_69 = arith.constant 0 : index
    %149 = vector.load %arg10[%c0_68, %c0_69] : memref<1x32xf32, #tpu.memory_space<vmem>>, vector<1x32xf32>
    %c0_70 = arith.constant 0 : index
    %c0_71 = arith.constant 0 : index
    %150 = vector.load %arg11[%c0_70, %c0_71] : memref<1x32xf32, #tpu.memory_space<vmem>>, vector<1x32xf32>
    %cst_72 = arith.constant dense<0.000000e+00> : vector<8xf32>
    %151 = vector.multi_reduction <add>, %123, %cst_72 [1] : vector<8x32xf32> to vector<8xf32>
    %152 = vector.shape_cast %151 : vector<8xf32> to vector<8x1xf32>
    %cst_73 = arith.constant 3.200000e+01 : f32
    %153 = vector.broadcast %cst_73 : f32 to vector<8x1xf32>
    %154 = arith.divf %152, %153 : vector<8x1xf32>
    %155 = vector.broadcast %154 : vector<8x1xf32> to vector<8x32xf32>
    %156 = arith.subf %123, %155 : vector<8x32xf32>
    %157 = arith.mulf %156, %156 : vector<8x32xf32>
    %cst_74 = arith.constant dense<0.000000e+00> : vector<8xf32>
    %158 = vector.multi_reduction <add>, %157, %cst_74 [1] : vector<8x32xf32> to vector<8xf32>
    %159 = vector.shape_cast %158 : vector<8xf32> to vector<8x1xf32>
    %cst_75 = arith.constant 3.200000e+01 : f32
    %160 = vector.broadcast %cst_75 : f32 to vector<8x1xf32>
    %161 = arith.divf %159, %160 : vector<8x1xf32>
    %162 = vector.broadcast %154 : vector<8x1xf32> to vector<8x32xf32>
    %163 = arith.subf %123, %162 : vector<8x32xf32>
    %cst_76 = arith.constant 9.99999974E-6 : f32
    %164 = vector.broadcast %cst_76 : f32 to vector<8x1xf32>
    %165 = arith.addf %161, %164 : vector<8x1xf32>
    %166 = math.rsqrt %165 : vector<8x1xf32>
    %167 = vector.broadcast %166 : vector<8x1xf32> to vector<8x32xf32>
    %168 = arith.mulf %163, %167 : vector<8x32xf32>
    %169 = vector.broadcast %149 : vector<1x32xf32> to vector<8x32xf32>
    %170 = arith.mulf %168, %169 : vector<8x32xf32>
    %171 = vector.broadcast %150 : vector<1x32xf32> to vector<8x32xf32>
    %172 = arith.addf %170, %171 : vector<8x32xf32>
    %173 = arith.addf %148, %172 : vector<8x32xf32>
    %c0_77 = arith.constant 0 : index
    %c0_78 = arith.constant 0 : index
    %c0_79 = arith.constant 0 : index
    %174 = vector.load %arg12[%c0_77, %c0_78, %c0_79] : memref<1x8x32xf32, #tpu.memory_space<vmem>>, vector<1x8x32xf32>
    %175 = vector.shape_cast %174 : vector<1x8x32xf32> to vector<8x32xf32>
    %176 = vector.shape_cast %173 : vector<8x32xf32> to vector<1x8x32xf32>
    tpu.vector_store %arg12[%c0_77, %c0_78, %c0_79], %176 {strides = array<i32>} : memref<1x8x32xf32, #tpu.memory_space<vmem>>, vector<1x8x32xf32>,
    %c0_80 = arith.constant 0 : index
    %c0_81 = arith.constant 0 : index
    %c0_82 = arith.constant 0 : index
    %177 = vector.load %arg13[%c0_80, %c0_81, %c0_82] : memref<1x8x32xf32, #tpu.memory_space<vmem>>, vector<1x8x32xf32>
    %178 = vector.shape_cast %177 : vector<1x8x32xf32> to vector<8x32xf32>
    %179 = vector.shape_cast %123 : vector<8x32xf32> to vector<1x8x32xf32>
    tpu.vector_store %arg13[%c0_80, %c0_81, %c0_82], %179 {strides = array<i32>} : memref<1x8x32xf32, #tpu.memory_space<vmem>>, vector<1x8x32xf32>,
    return
  }
  func.func @transform_0(%arg0: i32) -> (i32, i32, i32) {
    %c0_i32 = arith.constant 0 : i32
    %c0_i32_0 = arith.constant 0 : i32
    %c0_i32_1 = arith.constant 0 : i32
    return %arg0, %c0_i32, %c0_i32_0 : i32, i32, i32
  }
  func.func @transform_1(%arg0: i32) -> (i32, i32, i32) {
    %c0_i32 = arith.constant 0 : i32
    %c0_i32_0 = arith.constant 0 : i32
    %c0_i32_1 = arith.constant 0 : i32
    return %arg0, %c0_i32, %c0_i32_0 : i32, i32, i32
  }
  func.func @transform_2(%arg0: i32) -> (i32, i32, i32, i32) {
    %c0_i32 = arith.constant 0 : i32
    %c0_i32_0 = arith.constant 0 : i32
    %c0_i32_1 = arith.constant 0 : i32
    %c0_i32_2 = arith.constant 0 : i32
    return %arg0, %c0_i32, %c0_i32_0, %c0_i32_1 : i32, i32, i32, i32
  }
  func.func @transform_3(%arg0: i32) -> (i32, i32) {
    %c0_i32 = arith.constant 0 : i32
    %c0_i32_0 = arith.constant 0 : i32
    %c0_i32_1 = arith.constant 0 : i32
    return %c0_i32, %c0_i32_0 : i32, i32
  }
  func.func @transform_4(%arg0: i32) -> (i32, i32) {
    %c0_i32 = arith.constant 0 : i32
    %c0_i32_0 = arith.constant 0 : i32
    %c0_i32_1 = arith.constant 0 : i32
    return %c0_i32, %c0_i32_0 : i32, i32
  }
  func.func @transform_5(%arg0: i32) -> (i32, i32) {
    %c0_i32 = arith.constant 0 : i32
    %c0_i32_0 = arith.constant 0 : i32
    %c0_i32_1 = arith.constant 0 : i32
    return %c0_i32, %c0_i32_0 : i32, i32
  }
  func.func @transform_6(%arg0: i32) -> (i32, i32) {
    %c0_i32 = arith.constant 0 : i32
    %c0_i32_0 = arith.constant 0 : i32
    %c0_i32_1 = arith.constant 0 : i32
    return %c0_i32, %c0_i32_0 : i32, i32
  }
  func.func @transform_7(%arg0: i32) -> (i32, i32) {
    %c0_i32 = arith.constant 0 : i32
    %c0_i32_0 = arith.constant 0 : i32
    %c0_i32_1 = arith.constant 0 : i32
    return %c0_i32, %c0_i32_0 : i32, i32
  }
  func.func @transform_8(%arg0: i32) -> (i32, i32) {
    %c0_i32 = arith.constant 0 : i32
    %c0_i32_0 = arith.constant 0 : i32
    %c0_i32_1 = arith.constant 0 : i32
    return %c0_i32, %c0_i32_0 : i32, i32
  }
  func.func @transform_9(%arg0: i32) -> (i32, i32) {
    %c0_i32 = arith.constant 0 : i32
    %c0_i32_0 = arith.constant 0 : i32
    %c0_i32_1 = arith.constant 0 : i32
    return %c0_i32, %c0_i32_0 : i32, i32
  }
  func.func @transform_10(%arg0: i32) -> (i32, i32) {
    %c0_i32 = arith.constant 0 : i32
    %c0_i32_0 = arith.constant 0 : i32
    %c0_i32_1 = arith.constant 0 : i32
    return %c0_i32, %c0_i32_0 : i32, i32
  }
  func.func @transform_11(%arg0: i32) -> (i32, i32, i32) {
    %c0_i32 = arith.constant 0 : i32
    %c0_i32_0 = arith.constant 0 : i32
    %c0_i32_1 = arith.constant 0 : i32
    return %arg0, %c0_i32, %c0_i32_0 : i32, i32, i32
  }
  func.func @transform_12(%arg0: i32) -> (i32, i32, i32) {
    %c0_i32 = arith.constant 0 : i32
    %c0_i32_0 = arith.constant 0 : i32
    %c0_i32_1 = arith.constant 0 : i32
    return %arg0, %c0_i32, %c0_i32_0 : i32, i32, i32
  }
}

</mosaic_0001>

<llo_original>
// kernel: tpu_custom_call.1
$region0: #{tpu_custom_call.1}
  #allocation0 [shape = 'u32[]', space=smem, size = 0x4, offset = 0x4, fixed_abs, tag = 'smem constant byte address 0x4 - core index']
  #allocation1 [shape = 'u32[144,128]{1,0:T(1,128)}', space=vmem, size = 0x12000, scoped, tag = 'internal scratch']
  %s0 = inlined_call_operand.hbm [shape: f32[2,8,32], index: 0, kind: input, shape index: {}]
  %s1 = inlined_call_operand.hbm [shape: f32[2,8,32], index: 1, kind: input, shape index: {}]
  %s2 = inlined_call_operand.hbm [shape: f32[2,4,8,8], index: 2, kind: input, shape index: {}]
  %s3 = inlined_call_operand.hbm [shape: f32[32,96], index: 3, kind: input, shape index: {}]
  %s4 = inlined_call_operand.vmem [shape: f32[1,96], index: 4, kind: input, shape index: {}]
  %s5 = inlined_call_operand.hbm [shape: f32[32,32], index: 5, kind: input, shape index: {}]
  %s6 = inlined_call_operand.vmem [shape: f32[1,32], index: 6, kind: input, shape index: {}]
  %s7 = inlined_call_operand.vmem [shape: f32[1,32], index: 7, kind: input, shape index: {}]
  %s8 = inlined_call_operand.vmem [shape: f32[1,32], index: 8, kind: input, shape index: {}]
  %s9 = inlined_call_operand.vmem [shape: f32[1,32], index: 9, kind: input, shape index: {}]
  %s10 = inlined_call_operand.vmem [shape: f32[1,32], index: 10, kind: input, shape index: {}]
  %s11 = inlined_call_operand.hbm [shape: f32[2,8,32], index: 11, kind: output, shape index: {0}]
  %s12 = inlined_call_operand.hbm [shape: f32[2,8,32], index: 12, kind: output, shape index: {1}]
  %13 = xla_tuple %s11, %s12
  %s14 = sld [smem:[#allocation0]]
  $region105: #{tpu_custom_call.1} parent=0
    _
  %s16 = ssub.s32 1, %s14
  %s17 = scalar_select 0, %s16, %s14
  $region1: #{tpu_custom_call.1} parent=0
    #allocation2 [shape = 'u8[8192]{0}', space=vmem, size = 0x2000, scoped, tag = 'input window, operand 0']
    #allocation3 [shape = 's32[2]{0}', space=sflag, size = 0x8, scoped, tag = 'scoped memory for tpu_custom_call.1']
    #allocation4 [shape = 's32[2]{0}', space=sflag, size = 0x8, scoped, tag = 'scoped memory for tpu_custom_call.1']
    #allocation5 [shape = 'u8[8192]{0}', space=vmem, size = 0x2000, scoped, tag = 'input window, operand 1']
    #allocation6 [shape = 's32[2]{0}', space=sflag, size = 0x8, scoped, tag = 'scoped memory for tpu_custom_call.1']
    #allocation7 [shape = 'u8[32768]{0}', space=vmem, size = 0x8000, scoped, tag = 'input window, operand 2']
    #allocation8 [shape = 'u8[16384]{0}', space=vmem, size = 0x4000, scoped, tag = 'input window, operand 3, single buffered']
    #allocation9 [shape = 's32[1]{0}', space=sflag, size = 0x4, scoped, tag = 'scoped memory for tpu_custom_call.1']
    #allocation10 [shape = 'u8[16384]{0}', space=vmem, size = 0x4000, scoped, tag = 'input window, operand 5, single buffered']
    #allocation11 [shape = 'u8[8192]{0}', space=vmem, size = 0x2000, scoped, tag = 'output window, operand 0']
    #allocation12 [shape = 'u8[8192]{0}', space=vmem, size = 0x2000, scoped, tag = 'output window, operand 1']
    #allocation13 [shape = 's32[2]{0}', space=sflag, size = 0x8, scoped, tag = 'scoped memory for tpu_custom_call.1']
    %18 = vsyncpa [#allocation3], 0
    %s19 = scalar_lea.sflag [#allocation3], 1
    %20 = vsyncpa %s19, 0
    %21 = vsyncpa [#allocation6], 0
    %s22 = scalar_lea.sflag [#allocation6], 1
    %23 = vsyncpa %s22, 0
    %24 = vsyncpa [#allocation9], 0
    %25 = vsyncpa [#allocation4], 0
    %s26 = scalar_lea.sflag [#allocation4], 1
    %27 = vsyncpa %s26, 0
    %28 = vsyncpa [#allocation13], 0
    %s29 = scalar_lea.sflag [#allocation13], 1
    %30 = vsyncpa %s29, 0
    loop: start=0, step=1, limit=4
    $region2: #{tpu_custom_call.1} parent=1 // loop_pre_header
      _
    $region3: #{tpu_custom_call.1} parent=1 // loop_header
      %s32 = sphi 0, %s36
      %p33 = scmp.ge.s32.totalorder %s32, 4
      %s42 = sphi 0, %s44
      %s45 = sphi 0, %s42
      %s46 = sphi 0, %s45
      %s62 = sphi 0, %s46
      %s68 = sphi 0, %s70
      %s71 = sphi 0, %s68
      %s72 = sphi 0, %s71
      %s88 = sphi 0, %s72
      %s94 = sphi 0, %s96
      %s97 = sphi 0, %s94
      %s98 = sphi 0, %s97
      %s114 = sphi 0, %s98
      %s118 = sphi 0, %s118
      %s120 = sphi 0, %s118
      %s121 = sphi 0, %s120
      %s135 = sphi 0, %s121
      %s139 = sphi 0, %s139
      %s141 = sphi 0, %s139
      %s142 = sphi 0, %s141
      %s156 = sphi 0, %s142
      %s160 = sphi 0, %s160
      %s162 = sphi 0, %s160
      %s163 = sphi 0, %s162
      %s177 = sphi 0, %s163
      %s181 = sphi 0, %s181
      %s183 = sphi 0, %s181
      %s184 = sphi 0, %s183
      %s198 = sphi 0, %s184
      %s202 = sphi 0, %s202
      %s204 = sphi 0, %s202
      %s205 = sphi 0, %s204
      %s219 = sphi 0, %s205
      %s223 = sphi 0, %s223
      %s225 = sphi 0, %s223
      %s226 = sphi 0, %s225
      %s240 = sphi 0, %s226
      %s244 = sphi 0, %s244
      %s246 = sphi 0, %s244
      %s247 = sphi 0, %s246
      %s261 = sphi 0, %s247
      %s265 = sphi 0, %s265
      %s267 = sphi 0, %s265
      %s268 = sphi 0, %s267
      %s282 = sphi 0, %s268
      %s288 = sphi 0, %s290
      %s291 = sphi 0, %s288
      %s292 = sphi 0, %s291
      %s308 = sphi 0, %s292
      %s314 = sphi 0, %s316
      %s317 = sphi 0, %s314
      %s318 = sphi 0, %s317
      %s334 = sphi 0, %s318
    $region4: #{tpu_custom_call.1} parent=1 // loop_header_branch
      %35 = sbr.rel (%p33) target = $region8
    $region5: #{tpu_custom_call.1} parent=1 // loop_body
      %s37 = ssub.s32 %s32, 1
      %s38 = ssub.s32 %s32, 2
      %s39 = sadd.s32 %s32, 1
      %s40 = ssub.s32 %s32, %s39
      %p41 = scmp.eq.s32.totalorder %s40, 0
      %s43 = sadd.s32 %s42, 1
      %s44 = scalar_select %p41, %s42, %s43
      %p47 = pneg %p41
      %p48 = scmp.eq.s32.totalorder %s32, 1
      %p49 = por %p47, %p48
      %p50 = scmp.ne.s32.totalorder %s42, %s45
      %p51 = scmp.eq.s32.totalorder %s32, 0
      %p52 = por %p50, %p51
      %p53 = scmp.ne.s32.totalorder %s42, %s45
      %p54 = scmp.eq.s32.totalorder %s37, 1
      %p55 = por %p53, %p54
      %p56 = scmp.ne.s32.totalorder %s45, %s46
      %p57 = scmp.eq.s32.totalorder %s37, 0
      %p58 = por %p56, %p57
      %p59 = scmp.ne.s32.totalorder %s45, %s46
      %p60 = scmp.eq.s32.totalorder %s38, 1
      %p61 = por %p59, %p60
      %p63 = scmp.ne.s32.totalorder %s46, %s62
      %p64 = scmp.eq.s32.totalorder %s38, 0
      %p65 = por %p63, %p64
      %s66 = ssub.s32 %s32, %s39
      %p67 = scmp.eq.s32.totalorder %s66, 0
      %s69 = sadd.s32 %s68, 1
      %s70 = scalar_select %p67, %s68, %s69
      %p73 = pneg %p67
      %p74 = scmp.eq.s32.totalorder %s32, 1
      %p75 = por %p73, %p74
      %p76 = scmp.ne.s32.totalorder %s68, %s71
      %p77 = scmp.eq.s32.totalorder %s32, 0
      %p78 = por %p76, %p77
      %p79 = scmp.ne.s32.totalorder %s68, %s71
      %p80 = scmp.eq.s32.totalorder %s37, 1
      %p81 = por %p79, %p80
      %p82 = scmp.ne.s32.totalorder %s71, %s72
      %p83 = scmp.eq.s32.totalorder %s37, 0
      %p84 = por %p82, %p83
      %p85 = scmp.ne.s32.totalorder %s71, %s72
      %p86 = scmp.eq.s32.totalorder %s38, 1
      %p87 = por %p85, %p86
      %p89 = scmp.ne.s32.totalorder %s72, %s88
      %p90 = scmp.eq.s32.totalorder %s38, 0
      %p91 = por %p89, %p90
      %s92 = ssub.s32 %s32, %s39
      %p93 = scmp.eq.s32.totalorder %s92, 0
      %s95 = sadd.s32 %s94, 1
      %s96 = scalar_select %p93, %s94, %s95
      %p99 = pneg %p93
      %p100 = scmp.eq.s32.totalorder %s32, 1
      %p101 = por %p99, %p100
      %p102 = scmp.ne.s32.totalorder %s94, %s97
      %p103 = scmp.eq.s32.totalorder %s32, 0
      %p104 = por %p102, %p103
      %p105 = scmp.ne.s32.totalorder %s94, %s97
      %p106 = scmp.eq.s32.totalorder %s37, 1
      %p107 = por %p105, %p106
      %p108 = scmp.ne.s32.totalorder %s97, %s98
      %p109 = scmp.eq.s32.totalorder %s37, 0
      %p110 = por %p108, %p109
      %p111 = scmp.ne.s32.totalorder %s97, %s98
      %p112 = scmp.eq.s32.totalorder %s38, 1
      %p113 = por %p111, %p112
      %p115 = scmp.ne.s32.totalorder %s98, %s114
      %p116 = scmp.eq.s32.totalorder %s38, 0
      %p117 = por %p115, %p116
      %s119 = sadd.s32 %s118, 1
      %p122 = scmp.eq.s32.totalorder %s32, 1
      %p123 = scmp.ne.s32.totalorder %s118, %s120
      %p124 = scmp.eq.s32.totalorder %s32, 0
      %p125 = por %p123, %p124
      %p126 = scmp.ne.s32.totalorder %s118, %s120
      %p127 = scmp.eq.s32.totalorder %s37, 1
      %p128 = por %p126, %p127
      %p129 = scmp.ne.s32.totalorder %s120, %s121
      %p130 = scmp.eq.s32.totalorder %s37, 0
      %p131 = por %p129, %p130
      %p132 = scmp.ne.s32.totalorder %s120, %s121
      %p133 = scmp.eq.s32.totalorder %s38, 1
      %p134 = por %p132, %p133
      %p136 = scmp.ne.s32.totalorder %s121, %s135
      %p137 = scmp.eq.s32.totalorder %s38, 0
      %p138 = por %p136, %p137
      %s140 = sadd.s32 %s139, 1
      %p143 = scmp.eq.s32.totalorder %s32, 1
      %p144 = scmp.ne.s32.totalorder %s139, %s141
      %p145 = scmp.eq.s32.totalorder %s32, 0
      %p146 = por %p144, %p145
      %p147 = scmp.ne.s32.totalorder %s139, %s141
      %p148 = scmp.eq.s32.totalorder %s37, 1
      %p149 = por %p147, %p148
      %p150 = scmp.ne.s32.totalorder %s141, %s142
      %p151 = scmp.eq.s32.totalorder %s37, 0
      %p152 = por %p150, %p151
      %p153 = scmp.ne.s32.totalorder %s141, %s142
      %p154 = scmp.eq.s32.totalorder %s38, 1
      %p155 = por %p153, %p154
      %p157 = scmp.ne.s32.totalorder %s142, %s156
      %p158 = scmp.eq.s32.totalorder %s38, 0
      %p159 = por %p157, %p158
      %s161 = sadd.s32 %s160, 1
      %p164 = scmp.eq.s32.totalorder %s32, 1
      %p165 = scmp.ne.s32.totalorder %s160, %s162
      %p166 = scmp.eq.s32.totalorder %s32, 0
      %p167 = por %p165, %p166
      %p168 = scmp.ne.s32.totalorder %s160, %s162
      %p169 = scmp.eq.s32.totalorder %s37, 1
      %p170 = por %p168, %p169
      %p171 = scmp.ne.s32.totalorder %s162, %s163
      %p172 = scmp.eq.s32.totalorder %s37, 0
      %p173 = por %p171, %p172
      %p174 = scmp.ne.s32.totalorder %s162, %s163
      %p175 = scmp.eq.s32.totalorder %s38, 1
      %p176 = por %p174, %p175
      %p178 = scmp.ne.s32.totalorder %s163, %s177
      %p179 = scmp.eq.s32.totalorder %s38, 0
      %p180 = por %p178, %p179
      %s182 = sadd.s32 %s181, 1
      %p185 = scmp.eq.s32.totalorder %s32, 1
      %p186 = scmp.ne.s32.totalorder %s181, %s183
      %p187 = scmp.eq.s32.totalorder %s32, 0
      %p188 = por %p186, %p187
      %p189 = scmp.ne.s32.totalorder %s181, %s183
      %p190 = scmp.eq.s32.totalorder %s37, 1
      %p191 = por %p189, %p190
      %p192 = scmp.ne.s32.totalorder %s183, %s184
      %p193 = scmp.eq.s32.totalorder %s37, 0
      %p194 = por %p192, %p193
      %p195 = scmp.ne.s32.totalorder %s183, %s184
      %p196 = scmp.eq.s32.totalorder %s38, 1
      %p197 = por %p195, %p196
      %p199 = scmp.ne.s32.totalorder %s184, %s198
      %p200 = scmp.eq.s32.totalorder %s38, 0
      %p201 = por %p199, %p200
      %s203 = sadd.s32 %s202, 1
      %p206 = scmp.eq.s32.totalorder %s32, 1
      %p207 = scmp.ne.s32.totalorder %s202, %s204
      %p208 = scmp.eq.s32.totalorder %s32, 0
      %p209 = por %p207, %p208
      %p210 = scmp.ne.s32.totalorder %s202, %s204
      %p211 = scmp.eq.s32.totalorder %s37, 1
      %p212 = por %p210, %p211
      %p213 = scmp.ne.s32.totalorder %s204, %s205
      %p214 = scmp.eq.s32.totalorder %s37, 0
      %p215 = por %p213, %p214
      %p216 = scmp.ne.s32.totalorder %s204, %s205
      %p217 = scmp.eq.s32.totalorder %s38, 1
      %p218 = por %p216, %p217
      %p220 = scmp.ne.s32.totalorder %s205, %s219
      %p221 = scmp.eq.s32.totalorder %s38, 0
      %p222 = por %p220, %p221
      %s224 = sadd.s32 %s223, 1
      %p227 = scmp.eq.s32.totalorder %s32, 1
      %p228 = scmp.ne.s32.totalorder %s223, %s225
      %p229 = scmp.eq.s32.totalorder %s32, 0
      %p230 = por %p228, %p229
      %p231 = scmp.ne.s32.totalorder %s223, %s225
      %p232 = scmp.eq.s32.totalorder %s37, 1
      %p233 = por %p231, %p232
      %p234 = scmp.ne.s32.totalorder %s225, %s226
      %p235 = scmp.eq.s32.totalorder %s37, 0
      %p236 = por %p234, %p235
      %p237 = scmp.ne.s32.totalorder %s225, %s226
      %p238 = scmp.eq.s32.totalorder %s38, 1
      %p239 = por %p237, %p238
      %p241 = scmp.ne.s32.totalorder %s226, %s240
      %p242 = scmp.eq.s32.totalorder %s38, 0
      %p243 = por %p241, %p242
      %s245 = sadd.s32 %s244, 1
      %p248 = scmp.eq.s32.totalorder %s32, 1
      %p249 = scmp.ne.s32.totalorder %s244, %s246
      %p250 = scmp.eq.s32.totalorder %s32, 0
      %p251 = por %p249, %p250
      %p252 = scmp.ne.s32.totalorder %s244, %s246
      %p253 = scmp.eq.s32.totalorder %s37, 1
      %p254 = por %p252, %p253
      %p255 = scmp.ne.s32.totalorder %s246, %s247
      %p256 = scmp.eq.s32.totalorder %s37, 0
      %p257 = por %p255, %p256
      %p258 = scmp.ne.s32.totalorder %s246, %s247
      %p259 = scmp.eq.s32.totalorder %s38, 1
      %p260 = por %p258, %p259
      %p262 = scmp.ne.s32.totalorder %s247, %s261
      %p263 = scmp.eq.s32.totalorder %s38, 0
      %p264 = por %p262, %p263
      %s266 = sadd.s32 %s265, 1
      %p269 = scmp.eq.s32.totalorder %s32, 1
      %p270 = scmp.ne.s32.totalorder %s265, %s267
      %p271 = scmp.eq.s32.totalorder %s32, 0
      %p272 = por %p270, %p271
      %p273 = scmp.ne.s32.totalorder %s265, %s267
      %p274 = scmp.eq.s32.totalorder %s37, 1
      %p275 = por %p273, %p274
      %p276 = scmp.ne.s32.totalorder %s267, %s268
      %p277 = scmp.eq.s32.totalorder %s37, 0
      %p278 = por %p276, %p277
      %p279 = scmp.ne.s32.totalorder %s267, %s268
      %p280 = scmp.eq.s32.totalorder %s38, 1
      %p281 = por %p279, %p280
      %p283 = scmp.ne.s32.totalorder %s268, %s282
      %p284 = scmp.eq.s32.totalorder %s38, 0
      %p285 = por %p283, %p284
      %s286 = ssub.s32 %s32, %s39
      %p287 = scmp.eq.s32.totalorder %s286, 0
      %s289 = sadd.s32 %s288, 1
      %s290 = scalar_select %p287, %s288, %s289
      %p293 = pneg %p287
      %p294 = scmp.eq.s32.totalorder %s32, 1
      %p295 = por %p293, %p294
      %p296 = scmp.ne.s32.totalorder %s288, %s291
      %p297 = scmp.eq.s32.totalorder %s32, 0
      %p298 = por %p296, %p297
      %p299 = scmp.ne.s32.totalorder %s288, %s291
      %p300 = scmp.eq.s32.totalorder %s37, 1
      %p301 = por %p299, %p300
      %p302 = scmp.ne.s32.totalorder %s291, %s292
      %p303 = scmp.eq.s32.totalorder %s37, 0
      %p304 = por %p302, %p303
      %p305 = scmp.ne.s32.totalorder %s291, %s292
      %p306 = scmp.eq.s32.totalorder %s38, 1
      %p307 = por %p305, %p306
      %p309 = scmp.ne.s32.totalorder %s292, %s308
      %p310 = scmp.eq.s32.totalorder %s38, 0
      %p311 = por %p309, %p310
      %s312 = ssub.s32 %s32, %s39
      %p313 = scmp.eq.s32.totalorder %s312, 0
      %s315 = sadd.s32 %s314, 1
      %s316 = scalar_select %p313, %s314, %s315
      %p319 = pneg %p313
      %p320 = scmp.eq.s32.totalorder %s32, 1
      %p321 = por %p319, %p320
      %p322 = scmp.ne.s32.totalorder %s314, %s317
      %p323 = scmp.eq.s32.totalorder %s32, 0
      %p324 = por %p322, %p323
      %p325 = scmp.ne.s32.totalorder %s314, %s317
      %p326 = scmp.eq.s32.totalorder %s37, 1
      %p327 = por %p325, %p326
      %p328 = scmp.ne.s32.totalorder %s317, %s318
      %p329 = scmp.eq.s32.totalorder %s37, 0
      %p330 = por %p328, %p329
      %p331 = scmp.ne.s32.totalorder %s317, %s318
      %p332 = scmp.eq.s32.totalorder %s38, 1
      %p333 = por %p331, %p332
      %p335 = scmp.ne.s32.totalorder %s318, %s334
      %p336 = scmp.eq.s32.totalorder %s38, 0
      %p337 = por %p335, %p336
      %p338 = scmp.le.s32.totalorder 1, %s32
      %p339 = scmp.lt.s32.totalorder %s32, 3
      %p340 = pnand %p338, %p339
      %p341 = pneg %p340
      // Predicated region
      $region9: #{tpu_custom_call.1} parent=5 // pred_check
        _
      $region10: #{tpu_custom_call.1} parent=5 // pred_check_branch
        %343 = sbr.rel (%p340) target = $region12
      $region11: #{tpu_custom_call.1} parent=5 // pred_region
        %s344 = ssub.s32 %s32, 1
        // Predicated region
        $region13: #{tpu_custom_call.1} parent=11 // pred_check
          %p345 = pneg %p131
        $region14: #{tpu_custom_call.1} parent=11 // pred_check_branch
          %347 = sbr.rel (%p345) target = $region16
        $region15: #{tpu_custom_call.1} parent=11 // pred_region
          %s349 = ssub.s32 512, 512
          %350 = vsyncadd [#allocation9], %s349
          %s351 = sshll.u32 [#allocation8], 4
          %s352 = int_to_ptr.vmem [resolvable:$true] %s351
          %357 = dma.hbm_to_vmem [thread:$0]  %s3, 512, %s352, [#allocation9], 128, 128, 8
        $region16: #{tpu_custom_call.1} parent=11 // pred_fallthru
          _
        // Predicated region
        $region17: #{tpu_custom_call.1} parent=11 // pred_check
          %p358 = pneg %p152
        $region18: #{tpu_custom_call.1} parent=11 // pred_check_branch
          %360 = sbr.rel (%p358) target = $region20
        $region19: #{tpu_custom_call.1} parent=11 // pred_region
          _
        $region20: #{tpu_custom_call.1} parent=11 // pred_fallthru
          _
        // Predicated region
        $region21: #{tpu_custom_call.1} parent=11 // pred_check
          %p361 = pneg %p173
        $region22: #{tpu_custom_call.1} parent=11 // pred_check_branch
          %363 = sbr.rel (%p361) target = $region24
        $region23: #{tpu_custom_call.1} parent=11 // pred_region
          %s365 = ssub.s32 512, 512
          %366 = vsyncadd [#allocation9], %s365
          %s367 = sshll.u32 [#allocation10], 4
          %s368 = int_to_ptr.vmem [resolvable:$true] %s367
          %373 = dma.hbm_to_vmem [thread:$0]  %s5, 512, %s368, [#allocation9], 128, 128, 8
        $region24: #{tpu_custom_call.1} parent=11 // pred_fallthru
          _
        // Predicated region
        $region25: #{tpu_custom_call.1} parent=11 // pred_check
          %p374 = pneg %p194
        $region26: #{tpu_custom_call.1} parent=11 // pred_check_branch
          %376 = sbr.rel (%p374) target = $region28
        $region27: #{tpu_custom_call.1} parent=11 // pred_region
          _
        $region28: #{tpu_custom_call.1} parent=11 // pred_fallthru
          _
        // Predicated region
        $region29: #{tpu_custom_call.1} parent=11 // pred_check
          %p377 = pneg %p215
        $region30: #{tpu_custom_call.1} parent=11 // pred_check_branch
          %379 = sbr.rel (%p377) target = $region32
        $region31: #{tpu_custom_call.1} parent=11 // pred_region
          _
        $region32: #{tpu_custom_call.1} parent=11 // pred_fallthru
          _
        // Predicated region
        $region33: #{tpu_custom_call.1} parent=11 // pred_check
          %p380 = pneg %p236
        $region34: #{tpu_custom_call.1} parent=11 // pred_check_branch
          %382 = sbr.rel (%p380) target = $region36
        $region35: #{tpu_custom_call.1} parent=11 // pred_region
          _
        $region36: #{tpu_custom_call.1} parent=11 // pred_fallthru
          _
        // Predicated region
        $region37: #{tpu_custom_call.1} parent=11 // pred_check
          %p383 = pneg %p257
        $region38: #{tpu_custom_call.1} parent=11 // pred_check_branch
          %385 = sbr.rel (%p383) target = $region40
        $region39: #{tpu_custom_call.1} parent=11 // pred_region
          _
        $region40: #{tpu_custom_call.1} parent=11 // pred_fallthru
          _
        // Predicated region
        $region41: #{tpu_custom_call.1} parent=11 // pred_check
          %p386 = pneg %p278
        $region42: #{tpu_custom_call.1} parent=11 // pred_check_branch
          %388 = sbr.rel (%p386) target = $region44
        $region43: #{tpu_custom_call.1} parent=11 // pred_region
          _
        $region44: #{tpu_custom_call.1} parent=11 // pred_fallthru
          _
      $region12: #{tpu_custom_call.1} parent=5 // pred_fallthru
        _
      %p389 = scmp.lt.s32.totalorder %s32, 2
      // Predicated region
      $region45: #{tpu_custom_call.1} parent=5 // pred_check
        %p390 = pneg %p389
      $region46: #{tpu_custom_call.1} parent=5 // pred_check_branch
        %392 = sbr.rel (%p390) target = $region48
      $region47: #{tpu_custom_call.1} parent=5 // pred_region
        // Predicated region
        $region49: #{tpu_custom_call.1} parent=47 // pred_check
          %p393 = pneg %p52
        $region50: #{tpu_custom_call.1} parent=47 // pred_check_branch
          %395 = sbr.rel (%p393) target = $region52
        $region51: #{tpu_custom_call.1} parent=47 // pred_region
          %s396 = sand.u32 %s42, 1
          %s397 = scalar_lea.sflag [#allocation3], %s396
          %s398 = sand.u32 %s42, 1
          %s399 = smul.addr %s398, 8
          %s400 = scalar_lea.vmem [#allocation2], %s399
          %s402 = ssub.s32 128, 128
          %403 = vsyncadd %s397, %s402
          %s404 = smul.addr %s32, 128
          %s405 = scalar_lea.hbm %s0, %s404
          %s407 = sshll.u32 %s400, 4
          %s408 = int_to_ptr.vmem [resolvable:$true] %s407
          %410 = dma.hbm_to_vmem [thread:$0]  %s405, 128, %s408, %s397
        $region52: #{tpu_custom_call.1} parent=47 // pred_fallthru
          _
        // Predicated region
        $region53: #{tpu_custom_call.1} parent=47 // pred_check
          %p411 = pneg %p78
        $region54: #{tpu_custom_call.1} parent=47 // pred_check_branch
          %413 = sbr.rel (%p411) target = $region56
        $region55: #{tpu_custom_call.1} parent=47 // pred_region
          %s414 = sand.u32 %s32, 1
          %s415 = scalar_lea.sflag [#allocation6], %s414
          %s416 = sand.u32 %s68, 1
          %s417 = smul.addr %s416, 8
          %s418 = scalar_lea.vmem [#allocation5], %s417
          %s420 = ssub.s32 128, 128
          %421 = vsyncadd %s415, %s420
          %s422 = smul.addr %s32, 128
          %s423 = scalar_lea.hbm %s1, %s422
          %s425 = sshll.u32 %s418, 4
          %s426 = int_to_ptr.vmem [resolvable:$true] %s425
          %428 = dma.hbm_to_vmem [thread:$0]  %s423, 128, %s426, %s415
        $region56: #{tpu_custom_call.1} parent=47 // pred_fallthru
          _
        // Predicated region
        $region57: #{tpu_custom_call.1} parent=47 // pred_check
          %p429 = pneg %p104
        $region58: #{tpu_custom_call.1} parent=47 // pred_check_branch
          %431 = sbr.rel (%p429) target = $region60
        $region59: #{tpu_custom_call.1} parent=47 // pred_region
          %s432 = sand.u32 %s32, 1
          %s433 = scalar_lea.sflag [#allocation6], %s432
          %s434 = sand.u32 %s94, 1
          %s435 = smul.addr %s434, 32
          %s436 = scalar_lea.vmem [#allocation7], %s435
          %s438 = ssub.s32 512, 512
          %439 = vsyncadd %s433, %s438
          %s440 = smul.addr %s32, 4
          %s441 = smul.addr %s440, 128
          %s442 = scalar_lea.hbm %s2, %s441
          %s443 = sshll.u32 %s436, 4
          %s444 = int_to_ptr.vmem [resolvable:$true] %s443
          %449 = dma.hbm_to_vmem [thread:$0]  %s442, 512, %s444, %s433, 128, 128, 8
        $region60: #{tpu_custom_call.1} parent=47 // pred_fallthru
          _
      $region48: #{tpu_custom_call.1} parent=5 // pred_fallthru
        _
      %p450 = scmp.le.s32.totalorder 1, %s32
      %p451 = scmp.lt.s32.totalorder %s32, 3
      %p452 = pnand %p450, %p451
      %p453 = pneg %p452
      // Predicated region
      $region61: #{tpu_custom_call.1} parent=5 // pred_check
        _
      $region62: #{tpu_custom_call.1} parent=5 // pred_check_branch
        %455 = sbr.rel (%p452) target = $region64
      $region63: #{tpu_custom_call.1} parent=5 // pred_region
        %s456 = ssub.s32 %s32, 1
        %s457 = sand.u32 %s45, 1
        %s458 = scalar_lea.sflag [#allocation3], %s457
        %s459 = sand.u32 %s45, 1
        %s460 = smul.addr %s459, 8
        %s461 = scalar_lea.vmem [#allocation2], %s460
        // Predicated region
        $region65: #{tpu_custom_call.1} parent=63 // pred_check
          %p462 = pneg %p58
        $region66: #{tpu_custom_call.1} parent=63 // pred_check_branch
          %464 = sbr.rel (%p462) target = $region68
        $region67: #{tpu_custom_call.1} parent=63 // pred_region
          %465 = dma.done %s458, 128
        $region68: #{tpu_custom_call.1} parent=63 // pred_fallthru
          _
        %s466 = sand.u32 %s37, 1
        %s467 = scalar_lea.sflag [#allocation6], %s466
        %s468 = sand.u32 %s71, 1
        %s469 = smul.addr %s468, 8
        %s470 = scalar_lea.vmem [#allocation5], %s469
        // Predicated region
        $region69: #{tpu_custom_call.1} parent=63 // pred_check
          %p471 = pneg %p84
        $region70: #{tpu_custom_call.1} parent=63 // pred_check_branch
          %473 = sbr.rel (%p471) target = $region72
        $region71: #{tpu_custom_call.1} parent=63 // pred_region
          %474 = dma.done %s467, 128
        $region72: #{tpu_custom_call.1} parent=63 // pred_fallthru
          _
        %s475 = sand.u32 %s37, 1
        %s476 = scalar_lea.sflag [#allocation6], %s475
        %s477 = sand.u32 %s97, 1
        %s478 = smul.addr %s477, 32
        %s479 = scalar_lea.vmem [#allocation7], %s478
        // Predicated region
        $region73: #{tpu_custom_call.1} parent=63 // pred_check
          %p480 = pneg %p110
        $region74: #{tpu_custom_call.1} parent=63 // pred_check_branch
          %482 = sbr.rel (%p480) target = $region76
        $region75: #{tpu_custom_call.1} parent=63 // pred_region
          %483 = dma.done %s476, 512
        $region76: #{tpu_custom_call.1} parent=63 // pred_fallthru
          _
        // Predicated region
        $region77: #{tpu_custom_call.1} parent=63 // pred_check
          %p484 = pneg %p131
        $region78: #{tpu_custom_call.1} parent=63 // pred_check_branch
          %486 = sbr.rel (%p484) target = $region80
        $region79: #{tpu_custom_call.1} parent=63 // pred_region
          %487 = dma.done [#allocation9], 512
        $region80: #{tpu_custom_call.1} parent=63 // pred_fallthru
          _
        // Predicated region
        $region81: #{tpu_custom_call.1} parent=63 // pred_check
          %p488 = pneg %p173
        $region82: #{tpu_custom_call.1} parent=63 // pred_check_branch
          %490 = sbr.rel (%p488) target = $region84
        $region83: #{tpu_custom_call.1} parent=63 // pred_region
          %491 = dma.done [#allocation9], 512
        $region84: #{tpu_custom_call.1} parent=63 // pred_fallthru
          _
        %s492 = sand.u32 %s45, 1
        %s493 = scalar_lea.sflag [#allocation3], %s492
        %s494 = sand.u32 %s45, 1
        %s495 = smul.addr %s494, 8
        %s496 = scalar_lea.vmem [#allocation2], %s495
        %p497 = pneg %p58
        %p498 = pneg %p55
        %s499 = sand.u32 %s37, 1
        %s500 = scalar_lea.sflag [#allocation6], %s499
        %s501 = sand.u32 %s71, 1
        %s502 = smul.addr %s501, 8
        %s503 = scalar_lea.vmem [#allocation5], %s502
        %p504 = pneg %p84
        %p505 = pneg %p81
        %s506 = sand.u32 %s37, 1
        %s507 = scalar_lea.sflag [#allocation6], %s506
        %s508 = sand.u32 %s97, 1
        %s509 = smul.addr %s508, 32
        %s510 = scalar_lea.vmem [#allocation7], %s509
        %p511 = pneg %p110
        %p512 = pneg %p107
        %p513 = pneg %p131
        %p514 = pneg %p128
        %p515 = pneg %p152
        %p516 = pneg %p149
        %p517 = pneg %p173
        %p518 = pneg %p170
        %p519 = pneg %p194
        %p520 = pneg %p191
        %p521 = pneg %p215
        %p522 = pneg %p212
        %p523 = pneg %p236
        %p524 = pneg %p233
        %p525 = pneg %p257
        %p526 = pneg %p254
        %p527 = pneg %p278
        %p528 = pneg %p275
        %p529 = pneg %p304
        %p530 = pneg %p301
        %s531 = sand.u32 %s291, 1
        %s532 = scalar_lea.sflag [#allocation4], %s531
        %s533 = sand.u32 %s291, 1
        %s534 = smul.addr %s533, 8
        %s535 = scalar_lea.vmem [#allocation11], %s534
        %p536 = pneg %p330
        %p537 = pneg %p327
        %s538 = sand.u32 %s317, 1
        %s539 = scalar_lea.sflag [#allocation13], %s538
        %s540 = sand.u32 %s317, 1
        %s541 = smul.addr %s540, 8
        %s542 = scalar_lea.vmem [#allocation12], %s541
        %v543 = vld [vmem:[%s461] sm:$0xff]
        %v544 = vld [vmem:[%s470] sm:$0xff]
        %v545 = vld [vmem:[#allocation8] sm:$0xff]
        %v546 = vld [vmem:[#allocation8 + $0x8] sm:$0xff]
        %v547 = vld [vmem:[#allocation8 + $0x10] sm:$0xff]
        %v548 = vld [vmem:[#allocation8 + $0x18] sm:$0xff]
        %v549 = vld [vmem:[%s4] sm:$0x1]
        %v551 = vlaneseq
        %v552 = vshrl.u32 %v551, 7
        %v553 = vsub.s32 0, %v552
        %v554 = vrot.slane %v549, %v553
        %vm556 = vcmask 261120
        %v558 = vsel %vm556, %v543, 0
        %560 = vmatprep.subr.mxu0 0.0
        %561 = vmatpush1.msra.mxu0 %v545
        %562 = vmatprep.subr.mxu0 0.0
        %563 = vmatpush1.msra.mxu0 %v546
        %564 = vmatprep.subr.mxu0 0.0
        %565 = vmatpush1.msra.mxu0 %v547
        %566 = vmatprep.subr.mxu0 0.0
        %567 = vmatpush1.msra.mxu0 %v548
        %568 = vmatprep.subr.mxu0 0.0
        %569 = vmatpush1.msra.mxu0 0.0
        %570 = vmatprep.subr.mxu0 0.0
        %571 = vmatpush1.msra.mxu0 0.0
        %572 = vmatprep.subr.mxu0 0.0
        %573 = vmatpush1.msra.mxu0 0.0
        %574 = vmatprep.subr.mxu0 0.0
        %575 = vmatpush1.msra.mxu0 0.0
        %576 = vmatprep.subr.mxu0 0.0
        %577 = vmatpush1.msra.mxu0 0.0
        %578 = vmatprep.subr.mxu0 0.0
        %579 = vmatpush1.msra.mxu0 0.0
        %580 = vmatprep.subr.mxu0 0.0
        %581 = vmatpush1.msra.mxu0 0.0
        %582 = vmatprep.subr.mxu0 0.0
        %583 = vmatpush1.msra.mxu0 0.0
        %584 = vmatprep.subr.mxu0 0.0
        %585 = vmatpush1.msra.mxu0 0.0
        %586 = vmatprep.subr.mxu0 0.0
        %587 = vmatpush1.msra.mxu0 0.0
        %588 = vmatprep.subr.mxu0 0.0
        %589 = vmatpush1.msra.mxu0 0.0
        %590 = vmatprep.subr.mxu0 0.0
        %591 = vmatpush1.msra.mxu0 0.0
        %592 = vmatprep.subr.mxu0 0.0
        %593 = vmatpush1.msra.mxu0 0.0
        %594 = vmatprep.subr.mxu0 0.0
        %595 = vmatpush1.msra.mxu0 0.0
        %596 = vmatprep.subr.mxu0 0.0
        %597 = vmatpush1.msra.mxu0 0.0
        %598 = vmatprep.subr.mxu0 0.0
        %599 = vmatpush1.msra.mxu0 0.0
        %600 = vmatprep.subr.mxu0 0.0
        %601 = vmatpush1.msra.mxu0 0.0
        %602 = vmatprep.subr.mxu0 0.0
        %603 = vmatpush1.msra.mxu0 0.0
        %604 = vmatprep.subr.mxu0 0.0
        %605 = vmatpush1.msra.mxu0 0.0
        %606 = vmatprep.subr.mxu0 0.0
        %607 = vmatpush1.msra.mxu0 0.0
        %608 = vmatprep.subr.mxu0 0.0
        %609 = vmatpush1.msra.mxu0 0.0
        %610 = vmatprep.subr.mxu0 0.0
        %611 = vmatpush1.msra.mxu0 0.0
        %612 = vmatprep.subr.mxu0 0.0
        %613 = vmatpush1.msra.mxu0 0.0
        %614 = vmatprep.subr.mxu0 0.0
        %615 = vmatpush1.msra.mxu0 0.0
        %616 = vmatprep.subr.mxu0 0.0
        %617 = vmatpush1.msra.mxu0 0.0
        %618 = vmatprep.subr.mxu0 0.0
        %619 = vmatpush1.msra.mxu0 0.0
        %620 = vmatprep.subr.mxu0 0.0
        %621 = vmatpush1.msra.mxu0 0.0
        %622 = vmatprep.subr.mxu0 0.0
        %623 = vmatpush1.msra.mxu0 0.0
        %624 = vmatprep.mubr.f32.mxu0 0.0
        %625 = vmatmul.mubr.f32.gmra.mrb[0].mxu0 %v558
        %v626 = vpop.f32.mrb[0].mxu0
        %v627 = vadd.f32 %v554, %v626
        %v628 = vpop.f32.mrb[0].mxu0
        %629 = vdwg.mxu0
        %631 = vrot.lane.b32.xlu0 %v627, 96
        %v632 = vpop.permute.xlu0 %631
        %vm633 = vcmask 64512
        %v634 = vsel %vm633, %v627, 0
        %v636 = vsel %vm633, %v632, 0
        %638 = vmatprep.subr.mxu0 0.0
        %639 = vmatpush1.xpose.msra.mxu0 %v636
        %640 = vmatprep.subr.mxu0 0.0
        %641 = vmatpush1.xpose.msra.mxu0 0.0
        %642 = vmatprep.subr.mxu0 0.0
        %643 = vmatpush1.xpose.msra.mxu0 0.0
        %644 = vmatprep.subr.mxu0 0.0
        %645 = vmatpush1.xpose.msra.mxu0 0.0
        %646 = vmatprep.subr.mxu0 0.0
        %647 = vmatpush1.xpose.msra.mxu0 0.0
        %648 = vmatprep.subr.mxu0 0.0
        %649 = vmatpush1.xpose.msra.mxu0 0.0
        %650 = vmatprep.subr.mxu0 0.0
        %651 = vmatpush1.xpose.msra.mxu0 0.0
        %652 = vmatprep.subr.mxu0 0.0
        %653 = vmatpush1.xpose.msra.mxu0 0.0
        %654 = vmatprep.subr.mxu0 0.0
        %655 = vmatpush1.xpose.msra.mxu0 0.0
        %656 = vmatprep.subr.mxu0 0.0
        %657 = vmatpush1.xpose.msra.mxu0 0.0
        %658 = vmatprep.subr.mxu0 0.0
        %659 = vmatpush1.xpose.msra.mxu0 0.0
        %660 = vmatprep.subr.mxu0 0.0
        %661 = vmatpush1.xpose.msra.mxu0 0.0
        %662 = vmatprep.subr.mxu0 0.0
        %663 = vmatpush1.xpose.msra.mxu0 0.0
        %664 = vmatprep.subr.mxu0 0.0
        %665 = vmatpush1.xpose.msra.mxu0 0.0
        %666 = vmatprep.subr.mxu0 0.0
        %667 = vmatpush1.xpose.msra.mxu0 0.0
        %668 = vmatprep.subr.mxu0 0.0
        %669 = vmatpush1.xpose.msra.mxu0 0.0
        %670 = vmatprep.subr.mxu0 0.0
        %671 = vmatpush1.xpose.msra.mxu0 0.0
        %672 = vmatprep.subr.mxu0 0.0
        %673 = vmatpush1.xpose.msra.mxu0 0.0
        %674 = vmatprep.subr.mxu0 0.0
        %675 = vmatpush1.xpose.msra.mxu0 0.0
        %676 = vmatprep.subr.mxu0 0.0
        %677 = vmatpush1.xpose.msra.mxu0 0.0
        %678 = vmatprep.subr.mxu0 0.0
        %679 = vmatpush1.xpose.msra.mxu0 0.0
        %680 = vmatprep.subr.mxu0 0.0
        %681 = vmatpush1.xpose.msra.mxu0 0.0
        %682 = vmatprep.subr.mxu0 0.0
        %683 = vmatpush1.xpose.msra.mxu0 0.0
        %684 = vmatprep.subr.mxu0 0.0
        %685 = vmatpush1.xpose.msra.mxu0 0.0
        %686 = vmatprep.subr.mxu0 0.0
        %687 = vmatpush1.xpose.msra.mxu0 0.0
        %688 = vmatprep.subr.mxu0 0.0
        %689 = vmatpush1.xpose.msra.mxu0 0.0
        %690 = vmatprep.subr.mxu0 0.0
        %691 = vmatpush1.xpose.msra.mxu0 0.0
        %692 = vmatprep.subr.mxu0 0.0
        %693 = vmatpush1.xpose.msra.mxu0 0.0
        %694 = vmatprep.subr.mxu0 0.0
        %695 = vmatpush1.xpose.msra.mxu0 0.0
        %696 = vmatprep.subr.mxu0 0.0
        %697 = vmatpush1.xpose.msra.mxu0 0.0
        %698 = vmatprep.subr.mxu0 0.0
        %699 = vmatpush1.xpose.msra.mxu0 0.0
        %700 = vmatprep.subr.mxu0 0.0
        %701 = vmatpush1.xpose.msra.mxu0 0.0
        %702 = vmatprep.mubr.f32.mxu0 0.0
        %703 = vmatmul.mubr.f32.gmra.mrb[0].mxu0 %v634
        %v704 = vpop.f32.mrb[0].mxu0
        %v705 = vadd.f32 0.0, %v704
        %v706 = vpop.f32.mrb[0].mxu0
        %707 = vdwg.mxu0
        %v708 = vmul.f32 %v705, 0.35355338
        %v709 = vld [vmem:[%s479] sm:$0xff]
        %v710 = vadd.f32 %v708, %v709
        %v711 = vsel %vm633, %v710, -inf
        %712 = vmax.xlane.f32.xlu0 %v711
        %v713 = vpop.xlane.xlu0 %712
        %v714 = vsub.f32 %v710, %v713
        %v715 = vmul.f32 %v714, 1.442695
        %v716 = vpow.pop %v715
        %v717 = vsel %vm633, %v716, 0.0
        %718 = vadd.xlane.f32.xlu0 %v717
        %v719 = vpop.xlane.xlu0 %718
        %v720 = vrcp.pop %v719
        %v721 = vmul.f32 %v719, %v720
        %v722 = vsub.f32 2.0, %v721
        %v723 = vmul.f32 %v720, %v722
        %v724 = vmul.f32 %v716, %v723
        %725 = vrot.lane.b32.xlu0 %v627, 64
        %v726 = vpop.permute.xlu0 %725
        %v729 = vsel %vm633, %v724, 0
        %731 = vmatprep.subr.mxu0 0.0
        %732 = vmatpush1.msra.mxu0 %v726
        %733 = vmatprep.subr.mxu0 0.0
        %734 = vmatpush1.msra.mxu0 0.0
        %735 = vmatprep.subr.mxu0 0.0
        %736 = vmatpush1.msra.mxu0 0.0
        %737 = vmatprep.subr.mxu0 0.0
        %738 = vmatpush1.msra.mxu0 0.0
        %739 = vmatprep.subr.mxu0 0.0
        %740 = vmatpush1.msra.mxu0 0.0
        %741 = vmatprep.subr.mxu0 0.0
        %742 = vmatpush1.msra.mxu0 0.0
        %743 = vmatprep.subr.mxu0 0.0
        %744 = vmatpush1.msra.mxu0 0.0
        %745 = vmatprep.subr.mxu0 0.0
        %746 = vmatpush1.msra.mxu0 0.0
        %747 = vmatprep.subr.mxu0 0.0
        %748 = vmatpush1.msra.mxu0 0.0
        %749 = vmatprep.subr.mxu0 0.0
        %750 = vmatpush1.msra.mxu0 0.0
        %751 = vmatprep.subr.mxu0 0.0
        %752 = vmatpush1.msra.mxu0 0.0
        %753 = vmatprep.subr.mxu0 0.0
        %754 = vmatpush1.msra.mxu0 0.0
        %755 = vmatprep.subr.mxu0 0.0
        %756 = vmatpush1.msra.mxu0 0.0
        %757 = vmatprep.subr.mxu0 0.0
        %758 = vmatpush1.msra.mxu0 0.0
        %759 = vmatprep.subr.mxu0 0.0
        %760 = vmatpush1.msra.mxu0 0.0
        %761 = vmatprep.subr.mxu0 0.0
        %762 = vmatpush1.msra.mxu0 0.0
        %763 = vmatprep.subr.mxu0 0.0
        %764 = vmatpush1.msra.mxu0 0.0
        %765 = vmatprep.subr.mxu0 0.0
        %766 = vmatpush1.msra.mxu0 0.0
        %767 = vmatprep.subr.mxu0 0.0
        %768 = vmatpush1.msra.mxu0 0.0
        %769 = vmatprep.subr.mxu0 0.0
        %770 = vmatpush1.msra.mxu0 0.0
        %771 = vmatprep.subr.mxu0 0.0
        %772 = vmatpush1.msra.mxu0 0.0
        %773 = vmatprep.subr.mxu0 0.0
        %774 = vmatpush1.msra.mxu0 0.0
        %775 = vmatprep.subr.mxu0 0.0
        %776 = vmatpush1.msra.mxu0 0.0
        %777 = vmatprep.subr.mxu0 0.0
        %778 = vmatpush1.msra.mxu0 0.0
        %779 = vmatprep.subr.mxu0 0.0
        %780 = vmatpush1.msra.mxu0 0.0
        %781 = vmatprep.subr.mxu0 0.0
        %782 = vmatpush1.msra.mxu0 0.0
        %783 = vmatprep.subr.mxu0 0.0
        %784 = vmatpush1.msra.mxu0 0.0
        %785 = vmatprep.subr.mxu0 0.0
        %786 = vmatpush1.msra.mxu0 0.0
        %787 = vmatprep.subr.mxu0 0.0
        %788 = vmatpush1.msra.mxu0 0.0
        %789 = vmatprep.subr.mxu0 0.0
        %790 = vmatpush1.msra.mxu0 0.0
        %791 = vmatprep.subr.mxu0 0.0
        %792 = vmatpush1.msra.mxu0 0.0
        %793 = vmatprep.subr.mxu0 0.0
        %794 = vmatpush1.msra.mxu0 0.0
        %795 = vmatprep.mubr.f32.mxu0 0.0
        %796 = vmatmul.mubr.f32.gmra.mrb[0].mxu0 %v729
        %v797 = vpop.f32.mrb[0].mxu0
        %v798 = vadd.f32 0.0, %v797
        %v799 = vpop.f32.mrb[0].mxu0
        %800 = vdwg.mxu0
        %v801 = vld [vmem:[#allocation10] sm:$0xff]
        %802 = vrot.lane.b32.xlu0 %v627, 120
        %v803 = vpop.permute.xlu0 %802
        %804 = vrot.lane.b32.xlu0 %v627, 88
        %v805 = vpop.permute.xlu0 %804
        %v806 = vsel %vm633, %v803, 0
        %v808 = vsel %vm633, %v805, 0
        %810 = vmatprep.subr.mxu0 0.0
        %811 = vmatpush1.xpose.msra.mxu0 %v808
        %812 = vmatprep.subr.mxu0 0.0
        %813 = vmatpush1.xpose.msra.mxu0 0.0
        %814 = vmatprep.subr.mxu0 0.0
        %815 = vmatpush1.xpose.msra.mxu0 0.0
        %816 = vmatprep.subr.mxu0 0.0
        %817 = vmatpush1.xpose.msra.mxu0 0.0
        %818 = vmatprep.subr.mxu0 0.0
        %819 = vmatpush1.xpose.msra.mxu0 0.0
        %820 = vmatprep.subr.mxu0 0.0
        %821 = vmatpush1.xpose.msra.mxu0 0.0
        %822 = vmatprep.subr.mxu0 0.0
        %823 = vmatpush1.xpose.msra.mxu0 0.0
        %824 = vmatprep.subr.mxu0 0.0
        %825 = vmatpush1.xpose.msra.mxu0 0.0
        %826 = vmatprep.subr.mxu0 0.0
        %827 = vmatpush1.xpose.msra.mxu0 0.0
        %828 = vmatprep.subr.mxu0 0.0
        %829 = vmatpush1.xpose.msra.mxu0 0.0
        %830 = vmatprep.subr.mxu0 0.0
        %831 = vmatpush1.xpose.msra.mxu0 0.0
        %832 = vmatprep.subr.mxu0 0.0
        %833 = vmatpush1.xpose.msra.mxu0 0.0
        %834 = vmatprep.subr.mxu0 0.0
        %835 = vmatpush1.xpose.msra.mxu0 0.0
        %836 = vmatprep.subr.mxu0 0.0
        %837 = vmatpush1.xpose.msra.mxu0 0.0
        %838 = vmatprep.subr.mxu0 0.0
        %839 = vmatpush1.xpose.msra.mxu0 0.0
        %840 = vmatprep.subr.mxu0 0.0
        %841 = vmatpush1.xpose.msra.mxu0 0.0
        %842 = vmatprep.subr.mxu0 0.0
        %843 = vmatpush1.xpose.msra.mxu0 0.0
        %844 = vmatprep.subr.mxu0 0.0
        %845 = vmatpush1.xpose.msra.mxu0 0.0
        %846 = vmatprep.subr.mxu0 0.0
        %847 = vmatpush1.xpose.msra.mxu0 0.0
        %848 = vmatprep.subr.mxu0 0.0
        %849 = vmatpush1.xpose.msra.mxu0 0.0
        %850 = vmatprep.subr.mxu0 0.0
        %851 = vmatpush1.xpose.msra.mxu0 0.0
        %852 = vmatprep.subr.mxu0 0.0
        %853 = vmatpush1.xpose.msra.mxu0 0.0
        %854 = vmatprep.subr.mxu0 0.0
        %855 = vmatpush1.xpose.msra.mxu0 0.0
        %856 = vmatprep.subr.mxu0 0.0
        %857 = vmatpush1.xpose.msra.mxu0 0.0
        %858 = vmatprep.subr.mxu0 0.0
        %859 = vmatpush1.xpose.msra.mxu0 0.0
        %860 = vmatprep.subr.mxu0 0.0
        %861 = vmatpush1.xpose.msra.mxu0 0.0
        %862 = vmatprep.subr.mxu0 0.0
        %863 = vmatpush1.xpose.msra.mxu0 0.0
        %864 = vmatprep.subr.mxu0 0.0
        %865 = vmatpush1.xpose.msra.mxu0 0.0
        %866 = vmatprep.subr.mxu0 0.0
        %867 = vmatpush1.xpose.msra.mxu0 0.0
        %868 = vmatprep.subr.mxu0 0.0
        %869 = vmatpush1.xpose.msra.mxu0 0.0
        %870 = vmatprep.subr.mxu0 0.0
        %871 = vmatpush1.xpose.msra.mxu0 0.0
        %872 = vmatprep.subr.mxu0 0.0
        %873 = vmatpush1.xpose.msra.mxu0 0.0
        %874 = vmatprep.mubr.f32.mxu0 0.0
        %875 = vmatmul.mubr.f32.gmra.mrb[0].mxu0 %v806
        %v876 = vpop.f32.mrb[0].mxu0
        %v877 = vadd.f32 0.0, %v876
        %v878 = vpop.f32.mrb[0].mxu0
        %879 = vdwg.mxu0
        %v880 = vmul.f32 %v877, 0.35355338
        %s881 = scalar_lea.vmem %s479, 8 [#allocation7]
        %v882 = vld [vmem:[%s881] sm:$0xff]
        %v883 = vadd.f32 %v880, %v882
        %v884 = vsel %vm633, %v883, -inf
        %885 = vmax.xlane.f32.xlu0 %v884
        %v886 = vpop.xlane.xlu0 %885
        %v887 = vsub.f32 %v883, %v886
        %v888 = vmul.f32 %v887, 1.442695
        %v889 = vpow.pop %v888
        %v890 = vsel %vm633, %v889, 0.0
        %891 = vadd.xlane.f32.xlu0 %v890
        %v892 = vpop.xlane.xlu0 %891
        %v893 = vrcp.pop %v892
        %v894 = vmul.f32 %v892, %v893
        %v895 = vsub.f32 2.0, %v894
        %v896 = vmul.f32 %v893, %v895
        %v897 = vmul.f32 %v889, %v896
        %898 = vrot.lane.b32.xlu0 %v627, 56
        %v899 = vpop.permute.xlu0 %898
        %v902 = vsel %vm633, %v897, 0
        %904 = vmatprep.subr.mxu0 0.0
        %905 = vmatpush1.msra.mxu0 %v899
        %906 = vmatprep.subr.mxu0 0.0
        %907 = vmatpush1.msra.mxu0 0.0
        %908 = vmatprep.subr.mxu0 0.0
        %909 = vmatpush1.msra.mxu0 0.0
        %910 = vmatprep.subr.mxu0 0.0
        %911 = vmatpush1.msra.mxu0 0.0
        %912 = vmatprep.subr.mxu0 0.0
        %913 = vmatpush1.msra.mxu0 0.0
        %914 = vmatprep.subr.mxu0 0.0
        %915 = vmatpush1.msra.mxu0 0.0
        %916 = vmatprep.subr.mxu0 0.0
        %917 = vmatpush1.msra.mxu0 0.0
        %918 = vmatprep.subr.mxu0 0.0
        %919 = vmatpush1.msra.mxu0 0.0
        %920 = vmatprep.subr.mxu0 0.0
        %921 = vmatpush1.msra.mxu0 0.0
        %922 = vmatprep.subr.mxu0 0.0
        %923 = vmatpush1.msra.mxu0 0.0
        %924 = vmatprep.subr.mxu0 0.0
        %925 = vmatpush1.msra.mxu0 0.0
        %926 = vmatprep.subr.mxu0 0.0
        %927 = vmatpush1.msra.mxu0 0.0
        %928 = vmatprep.subr.mxu0 0.0
        %929 = vmatpush1.msra.mxu0 0.0
        %930 = vmatprep.subr.mxu0 0.0
        %931 = vmatpush1.msra.mxu0 0.0
        %932 = vmatprep.subr.mxu0 0.0
        %933 = vmatpush1.msra.mxu0 0.0
        %934 = vmatprep.subr.mxu0 0.0
        %935 = vmatpush1.msra.mxu0 0.0
        %936 = vmatprep.subr.mxu0 0.0
        %937 = vmatpush1.msra.mxu0 0.0
        %938 = vmatprep.subr.mxu0 0.0
        %939 = vmatpush1.msra.mxu0 0.0
        %940 = vmatprep.subr.mxu0 0.0
        %941 = vmatpush1.msra.mxu0 0.0
        %942 = vmatprep.subr.mxu0 0.0
        %943 = vmatpush1.msra.mxu0 0.0
        %944 = vmatprep.subr.mxu0 0.0
        %945 = vmatpush1.msra.mxu0 0.0
        %946 = vmatprep.subr.mxu0 0.0
        %947 = vmatpush1.msra.mxu0 0.0
        %948 = vmatprep.subr.mxu0 0.0
        %949 = vmatpush1.msra.mxu0 0.0
        %950 = vmatprep.subr.mxu0 0.0
        %951 = vmatpush1.msra.mxu0 0.0
        %952 = vmatprep.subr.mxu0 0.0
        %953 = vmatpush1.msra.mxu0 0.0
        %954 = vmatprep.subr.mxu0 0.0
        %955 = vmatpush1.msra.mxu0 0.0
        %956 = vmatprep.subr.mxu0 0.0
        %957 = vmatpush1.msra.mxu0 0.0
        %958 = vmatprep.subr.mxu0 0.0
        %959 = vmatpush1.msra.mxu0 0.0
        %960 = vmatprep.subr.mxu0 0.0
        %961 = vmatpush1.msra.mxu0 0.0
        %962 = vmatprep.subr.mxu0 0.0
        %963 = vmatpush1.msra.mxu0 0.0
        %964 = vmatprep.subr.mxu0 0.0
        %965 = vmatpush1.msra.mxu0 0.0
        %966 = vmatprep.subr.mxu0 0.0
        %967 = vmatpush1.msra.mxu0 0.0
        %968 = vmatprep.mubr.f32.mxu0 0.0
        %969 = vmatmul.mubr.f32.gmra.mrb[0].mxu0 %v902
        %v970 = vpop.f32.mrb[0].mxu0
        %v971 = vadd.f32 0.0, %v970
        %v972 = vpop.f32.mrb[0].mxu0
        %973 = vdwg.mxu0
        %v974 = vld [vmem:[#allocation10 + $0x8] sm:$0xff]
        %v976 = vsel %vm633, %v971, 0
        %978 = vmatprep.subr.mxu0 0.0
        %979 = vmatpush1.msra.mxu0 %v974
        %980 = vmatprep.subr.mxu0 0.0
        %981 = vmatpush1.msra.mxu0 0.0
        %982 = vmatprep.subr.mxu0 0.0
        %983 = vmatpush1.msra.mxu0 0.0
        %984 = vmatprep.subr.mxu0 0.0
        %985 = vmatpush1.msra.mxu0 0.0
        %986 = vmatprep.subr.mxu0 0.0
        %987 = vmatpush1.msra.mxu0 0.0
        %988 = vmatprep.subr.mxu0 0.0
        %989 = vmatpush1.msra.mxu0 0.0
        %990 = vmatprep.subr.mxu0 0.0
        %991 = vmatpush1.msra.mxu0 0.0
        %992 = vmatprep.subr.mxu0 0.0
        %993 = vmatpush1.msra.mxu0 0.0
        %994 = vmatprep.subr.mxu0 0.0
        %995 = vmatpush1.msra.mxu0 0.0
        %996 = vmatprep.subr.mxu0 0.0
        %997 = vmatpush1.msra.mxu0 0.0
        %998 = vmatprep.subr.mxu0 0.0
        %999 = vmatpush1.msra.mxu0 0.0
        %1000 = vmatprep.subr.mxu0 0.0
        %1001 = vmatpush1.msra.mxu0 0.0
        %1002 = vmatprep.subr.mxu0 0.0
        %1003 = vmatpush1.msra.mxu0 0.0
        %1004 = vmatprep.subr.mxu0 0.0
        %1005 = vmatpush1.msra.mxu0 0.0
        %1006 = vmatprep.subr.mxu0 0.0
        %1007 = vmatpush1.msra.mxu0 0.0
        %1008 = vmatprep.subr.mxu0 0.0
        %1009 = vmatpush1.msra.mxu0 0.0
        %1010 = vmatprep.subr.mxu0 0.0
        %1011 = vmatpush1.msra.mxu0 0.0
        %1012 = vmatprep.subr.mxu0 0.0
        %1013 = vmatpush1.msra.mxu0 0.0
        %1014 = vmatprep.subr.mxu0 0.0
        %1015 = vmatpush1.msra.mxu0 0.0
        %1016 = vmatprep.subr.mxu0 0.0
        %1017 = vmatpush1.msra.mxu0 0.0
        %1018 = vmatprep.subr.mxu0 0.0
        %1019 = vmatpush1.msra.mxu0 0.0
        %1020 = vmatprep.subr.mxu0 0.0
        %1021 = vmatpush1.msra.mxu0 0.0
        %1022 = vmatprep.subr.mxu0 0.0
        %1023 = vmatpush1.msra.mxu0 0.0
        %1024 = vmatprep.subr.mxu0 0.0
        %1025 = vmatpush1.msra.mxu0 0.0
        %1026 = vmatprep.subr.mxu0 0.0
        %1027 = vmatpush1.msra.mxu0 0.0
        %1028 = vmatprep.subr.mxu0 0.0
        %1029 = vmatpush1.msra.mxu0 0.0
        %1030 = vmatprep.subr.mxu0 0.0
        %1031 = vmatpush1.msra.mxu0 0.0
        %1032 = vmatprep.subr.mxu0 0.0
        %1033 = vmatpush1.msra.mxu0 0.0
        %1034 = vmatprep.subr.mxu0 0.0
        %1035 = vmatpush1.msra.mxu0 0.0
        %1036 = vmatprep.subr.mxu0 0.0
        %1037 = vmatpush1.msra.mxu0 0.0
        %1038 = vmatprep.subr.mxu0 0.0
        %1039 = vmatpush1.msra.mxu0 0.0
        %1040 = vmatprep.subr.mxu0 0.0
        %1041 = vmatpush1.msra.mxu0 0.0
        %1042 = vmatprep.mubr.f32.mxu0 0.0
        %1043 = vmatmul.mubr.f32.gmra.mrb[0].mxu0 %v976
        %v1044 = vpop.f32.mrb[0].mxu0
        %v1045 = vadd.f32 0.0, %v1044
        %v1046 = vpop.f32.mrb[0].mxu0
        %1047 = vdwg.mxu0
        %v1049 = vsel %vm633, %v798, 0
        %1051 = vmatprep.subr.mxu0 0.0
        %1052 = vmatpush1.msra.mxu0 %v801
        %1053 = vmatprep.subr.mxu0 0.0
        %1054 = vmatpush1.msra.mxu0 0.0
        %1055 = vmatprep.subr.mxu0 0.0
        %1056 = vmatpush1.msra.mxu0 0.0
        %1057 = vmatprep.subr.mxu0 0.0
        %1058 = vmatpush1.msra.mxu0 0.0
        %1059 = vmatprep.subr.mxu0 0.0
        %1060 = vmatpush1.msra.mxu0 0.0
        %1061 = vmatprep.subr.mxu0 0.0
        %1062 = vmatpush1.msra.mxu0 0.0
        %1063 = vmatprep.subr.mxu0 0.0
        %1064 = vmatpush1.msra.mxu0 0.0
        %1065 = vmatprep.subr.mxu0 0.0
        %1066 = vmatpush1.msra.mxu0 0.0
        %1067 = vmatprep.subr.mxu0 0.0
        %1068 = vmatpush1.msra.mxu0 0.0
        %1069 = vmatprep.subr.mxu0 0.0
        %1070 = vmatpush1.msra.mxu0 0.0
        %1071 = vmatprep.subr.mxu0 0.0
        %1072 = vmatpush1.msra.mxu0 0.0
        %1073 = vmatprep.subr.mxu0 0.0
        %1074 = vmatpush1.msra.mxu0 0.0
        %1075 = vmatprep.subr.mxu0 0.0
        %1076 = vmatpush1.msra.mxu0 0.0
        %1077 = vmatprep.subr.mxu0 0.0
        %1078 = vmatpush1.msra.mxu0 0.0
        %1079 = vmatprep.subr.mxu0 0.0
        %1080 = vmatpush1.msra.mxu0 0.0
        %1081 = vmatprep.subr.mxu0 0.0
        %1082 = vmatpush1.msra.mxu0 0.0
        %1083 = vmatprep.subr.mxu0 0.0
        %1084 = vmatpush1.msra.mxu0 0.0
        %1085 = vmatprep.subr.mxu0 0.0
        %1086 = vmatpush1.msra.mxu0 0.0
        %1087 = vmatprep.subr.mxu0 0.0
        %1088 = vmatpush1.msra.mxu0 0.0
        %1089 = vmatprep.subr.mxu0 0.0
        %1090 = vmatpush1.msra.mxu0 0.0
        %1091 = vmatprep.subr.mxu0 0.0
        %1092 = vmatpush1.msra.mxu0 0.0
        %1093 = vmatprep.subr.mxu0 0.0
        %1094 = vmatpush1.msra.mxu0 0.0
        %1095 = vmatprep.subr.mxu0 0.0
        %1096 = vmatpush1.msra.mxu0 0.0
        %1097 = vmatprep.subr.mxu0 0.0
        %1098 = vmatpush1.msra.mxu0 0.0
        %1099 = vmatprep.subr.mxu0 0.0
        %1100 = vmatpush1.msra.mxu0 0.0
        %1101 = vmatprep.subr.mxu0 0.0
        %1102 = vmatpush1.msra.mxu0 0.0
        %1103 = vmatprep.subr.mxu0 0.0
        %1104 = vmatpush1.msra.mxu0 0.0
        %1105 = vmatprep.subr.mxu0 0.0
        %1106 = vmatpush1.msra.mxu0 0.0
        %1107 = vmatprep.subr.mxu0 0.0
        %1108 = vmatpush1.msra.mxu0 0.0
        %1109 = vmatprep.subr.mxu0 0.0
        %1110 = vmatpush1.msra.mxu0 0.0
        %1111 = vmatprep.subr.mxu0 0.0
        %1112 = vmatpush1.msra.mxu0 0.0
        %1113 = vmatprep.subr.mxu0 0.0
        %1114 = vmatpush1.msra.mxu0 0.0
        %1115 = vmatprep.mubr.f32.mxu0 0.0
        %1116 = vmatmul.mubr.f32.gmra.mrb[0].mxu0 %v1049
        %v1117 = vpop.f32.mrb[0].mxu0
        %v1118 = vadd.f32 %v1045, %v1117
        %v1119 = vpop.f32.mrb[0].mxu0
        %1120 = vdwg.mxu0
        %1121 = vrot.lane.b32.xlu0 %v627, 112
        %v1122 = vpop.permute.xlu0 %1121
        %1123 = vrot.lane.b32.xlu0 %v627, 80
        %v1124 = vpop.permute.xlu0 %1123
        %v1125 = vsel %vm633, %v1122, 0
        %v1127 = vsel %vm633, %v1124, 0
        %1129 = vmatprep.subr.mxu0 0.0
        %1130 = vmatpush1.xpose.msra.mxu0 %v1127
        %1131 = vmatprep.subr.mxu0 0.0
        %1132 = vmatpush1.xpose.msra.mxu0 0.0
        %1133 = vmatprep.subr.mxu0 0.0
        %1134 = vmatpush1.xpose.msra.mxu0 0.0
        %1135 = vmatprep.subr.mxu0 0.0
        %1136 = vmatpush1.xpose.msra.mxu0 0.0
        %1137 = vmatprep.subr.mxu0 0.0
        %1138 = vmatpush1.xpose.msra.mxu0 0.0
        %1139 = vmatprep.subr.mxu0 0.0
        %1140 = vmatpush1.xpose.msra.mxu0 0.0
        %1141 = vmatprep.subr.mxu0 0.0
        %1142 = vmatpush1.xpose.msra.mxu0 0.0
        %1143 = vmatprep.subr.mxu0 0.0
        %1144 = vmatpush1.xpose.msra.mxu0 0.0
        %1145 = vmatprep.subr.mxu0 0.0
        %1146 = vmatpush1.xpose.msra.mxu0 0.0
        %1147 = vmatprep.subr.mxu0 0.0
        %1148 = vmatpush1.xpose.msra.mxu0 0.0
        %1149 = vmatprep.subr.mxu0 0.0
        %1150 = vmatpush1.xpose.msra.mxu0 0.0
        %1151 = vmatprep.subr.mxu0 0.0
        %1152 = vmatpush1.xpose.msra.mxu0 0.0
        %1153 = vmatprep.subr.mxu0 0.0
        %1154 = vmatpush1.xpose.msra.mxu0 0.0
        %1155 = vmatprep.subr.mxu0 0.0
        %1156 = vmatpush1.xpose.msra.mxu0 0.0
        %1157 = vmatprep.subr.mxu0 0.0
        %1158 = vmatpush1.xpose.msra.mxu0 0.0
        %1159 = vmatprep.subr.mxu0 0.0
        %1160 = vmatpush1.xpose.msra.mxu0 0.0
        %1161 = vmatprep.subr.mxu0 0.0
        %1162 = vmatpush1.xpose.msra.mxu0 0.0
        %1163 = vmatprep.subr.mxu0 0.0
        %1164 = vmatpush1.xpose.msra.mxu0 0.0
        %1165 = vmatprep.subr.mxu0 0.0
        %1166 = vmatpush1.xpose.msra.mxu0 0.0
        %1167 = vmatprep.subr.mxu0 0.0
        %1168 = vmatpush1.xpose.msra.mxu0 0.0
        %1169 = vmatprep.subr.mxu0 0.0
        %1170 = vmatpush1.xpose.msra.mxu0 0.0
        %1171 = vmatprep.subr.mxu0 0.0
        %1172 = vmatpush1.xpose.msra.mxu0 0.0
        %1173 = vmatprep.subr.mxu0 0.0
        %1174 = vmatpush1.xpose.msra.mxu0 0.0
        %1175 = vmatprep.subr.mxu0 0.0
        %1176 = vmatpush1.xpose.msra.mxu0 0.0
        %1177 = vmatprep.subr.mxu0 0.0
        %1178 = vmatpush1.xpose.msra.mxu0 0.0
        %1179 = vmatprep.subr.mxu0 0.0
        %1180 = vmatpush1.xpose.msra.mxu0 0.0
        %1181 = vmatprep.subr.mxu0 0.0
        %1182 = vmatpush1.xpose.msra.mxu0 0.0
        %1183 = vmatprep.subr.mxu0 0.0
        %1184 = vmatpush1.xpose.msra.mxu0 0.0
        %1185 = vmatprep.subr.mxu0 0.0
        %1186 = vmatpush1.xpose.msra.mxu0 0.0
        %1187 = vmatprep.subr.mxu0 0.0
        %1188 = vmatpush1.xpose.msra.mxu0 0.0
        %1189 = vmatprep.subr.mxu0 0.0
        %1190 = vmatpush1.xpose.msra.mxu0 0.0
        %1191 = vmatprep.subr.mxu0 0.0
        %1192 = vmatpush1.xpose.msra.mxu0 0.0
        %1193 = vmatprep.mubr.f32.mxu0 0.0
        %1194 = vmatmul.mubr.f32.gmra.mrb[0].mxu0 %v1125
        %v1195 = vpop.f32.mrb[0].mxu0
        %v1196 = vadd.f32 0.0, %v1195
        %v1197 = vpop.f32.mrb[0].mxu0
        %1198 = vdwg.mxu0
        %v1199 = vmul.f32 %v1196, 0.35355338
        %s1200 = scalar_lea.vmem %s479, 16 [#allocation7]
        %v1201 = vld [vmem:[%s1200] sm:$0xff]
        %v1202 = vadd.f32 %v1199, %v1201
        %v1203 = vsel %vm633, %v1202, -inf
        %1204 = vmax.xlane.f32.xlu0 %v1203
        %v1205 = vpop.xlane.xlu0 %1204
        %v1206 = vsub.f32 %v1202, %v1205
        %v1207 = vmul.f32 %v1206, 1.442695
        %v1208 = vpow.pop %v1207
        %v1209 = vsel %vm633, %v1208, 0.0
        %1210 = vadd.xlane.f32.xlu0 %v1209
        %v1211 = vpop.xlane.xlu0 %1210
        %v1212 = vrcp.pop %v1211
        %v1213 = vmul.f32 %v1211, %v1212
        %v1214 = vsub.f32 2.0, %v1213
        %v1215 = vmul.f32 %v1212, %v1214
        %v1216 = vmul.f32 %v1208, %v1215
        %1217 = vrot.lane.b32.xlu0 %v627, 48
        %v1218 = vpop.permute.xlu0 %1217
        %v1221 = vsel %vm633, %v1216, 0
        %1223 = vmatprep.subr.mxu0 0.0
        %1224 = vmatpush1.msra.mxu0 %v1218
        %1225 = vmatprep.subr.mxu0 0.0
        %1226 = vmatpush1.msra.mxu0 0.0
        %1227 = vmatprep.subr.mxu0 0.0
        %1228 = vmatpush1.msra.mxu0 0.0
        %1229 = vmatprep.subr.mxu0 0.0
        %1230 = vmatpush1.msra.mxu0 0.0
        %1231 = vmatprep.subr.mxu0 0.0
        %1232 = vmatpush1.msra.mxu0 0.0
        %1233 = vmatprep.subr.mxu0 0.0
        %1234 = vmatpush1.msra.mxu0 0.0
        %1235 = vmatprep.subr.mxu0 0.0
        %1236 = vmatpush1.msra.mxu0 0.0
        %1237 = vmatprep.subr.mxu0 0.0
        %1238 = vmatpush1.msra.mxu0 0.0
        %1239 = vmatprep.subr.mxu0 0.0
        %1240 = vmatpush1.msra.mxu0 0.0
        %1241 = vmatprep.subr.mxu0 0.0
        %1242 = vmatpush1.msra.mxu0 0.0
        %1243 = vmatprep.subr.mxu0 0.0
        %1244 = vmatpush1.msra.mxu0 0.0
        %1245 = vmatprep.subr.mxu0 0.0
        %1246 = vmatpush1.msra.mxu0 0.0
        %1247 = vmatprep.subr.mxu0 0.0
        %1248 = vmatpush1.msra.mxu0 0.0
        %1249 = vmatprep.subr.mxu0 0.0
        %1250 = vmatpush1.msra.mxu0 0.0
        %1251 = vmatprep.subr.mxu0 0.0
        %1252 = vmatpush1.msra.mxu0 0.0
        %1253 = vmatprep.subr.mxu0 0.0
        %1254 = vmatpush1.msra.mxu0 0.0
        %1255 = vmatprep.subr.mxu0 0.0
        %1256 = vmatpush1.msra.mxu0 0.0
        %1257 = vmatprep.subr.mxu0 0.0
        %1258 = vmatpush1.msra.mxu0 0.0
        %1259 = vmatprep.subr.mxu0 0.0
        %1260 = vmatpush1.msra.mxu0 0.0
        %1261 = vmatprep.subr.mxu0 0.0
        %1262 = vmatpush1.msra.mxu0 0.0
        %1263 = vmatprep.subr.mxu0 0.0
        %1264 = vmatpush1.msra.mxu0 0.0
        %1265 = vmatprep.subr.mxu0 0.0
        %1266 = vmatpush1.msra.mxu0 0.0
        %1267 = vmatprep.subr.mxu0 0.0
        %1268 = vmatpush1.msra.mxu0 0.0
        %1269 = vmatprep.subr.mxu0 0.0
        %1270 = vmatpush1.msra.mxu0 0.0
        %1271 = vmatprep.subr.mxu0 0.0
        %1272 = vmatpush1.msra.mxu0 0.0
        %1273 = vmatprep.subr.mxu0 0.0
        %1274 = vmatpush1.msra.mxu0 0.0
        %1275 = vmatprep.subr.mxu0 0.0
        %1276 = vmatpush1.msra.mxu0 0.0
        %1277 = vmatprep.subr.mxu0 0.0
        %1278 = vmatpush1.msra.mxu0 0.0
        %1279 = vmatprep.subr.mxu0 0.0
        %1280 = vmatpush1.msra.mxu0 0.0
        %1281 = vmatprep.subr.mxu0 0.0
        %1282 = vmatpush1.msra.mxu0 0.0
        %1283 = vmatprep.subr.mxu0 0.0
        %1284 = vmatpush1.msra.mxu0 0.0
        %1285 = vmatprep.subr.mxu0 0.0
        %1286 = vmatpush1.msra.mxu0 0.0
        %1287 = vmatprep.mubr.f32.mxu0 0.0
        %1288 = vmatmul.mubr.f32.gmra.mrb[0].mxu0 %v1221
        %v1289 = vpop.f32.mrb[0].mxu0
        %v1290 = vadd.f32 0.0, %v1289
        %v1291 = vpop.f32.mrb[0].mxu0
        %1292 = vdwg.mxu0
        %v1293 = vld [vmem:[#allocation10 + $0x10] sm:$0xff]
        %v1295 = vsel %vm633, %v1290, 0
        %1297 = vmatprep.subr.mxu0 0.0
        %1298 = vmatpush1.msra.mxu0 %v1293
        %1299 = vmatprep.subr.mxu0 0.0
        %1300 = vmatpush1.msra.mxu0 0.0
        %1301 = vmatprep.subr.mxu0 0.0
        %1302 = vmatpush1.msra.mxu0 0.0
        %1303 = vmatprep.subr.mxu0 0.0
        %1304 = vmatpush1.msra.mxu0 0.0
        %1305 = vmatprep.subr.mxu0 0.0
        %1306 = vmatpush1.msra.mxu0 0.0
        %1307 = vmatprep.subr.mxu0 0.0
        %1308 = vmatpush1.msra.mxu0 0.0
        %1309 = vmatprep.subr.mxu0 0.0
        %1310 = vmatpush1.msra.mxu0 0.0
        %1311 = vmatprep.subr.mxu0 0.0
        %1312 = vmatpush1.msra.mxu0 0.0
        %1313 = vmatprep.subr.mxu0 0.0
        %1314 = vmatpush1.msra.mxu0 0.0
        %1315 = vmatprep.subr.mxu0 0.0
        %1316 = vmatpush1.msra.mxu0 0.0
        %1317 = vmatprep.subr.mxu0 0.0
        %1318 = vmatpush1.msra.mxu0 0.0
        %1319 = vmatprep.subr.mxu0 0.0
        %1320 = vmatpush1.msra.mxu0 0.0
        %1321 = vmatprep.subr.mxu0 0.0
        %1322 = vmatpush1.msra.mxu0 0.0
        %1323 = vmatprep.subr.mxu0 0.0
        %1324 = vmatpush1.msra.mxu0 0.0
        %1325 = vmatprep.subr.mxu0 0.0
        %1326 = vmatpush1.msra.mxu0 0.0
        %1327 = vmatprep.subr.mxu0 0.0
        %1328 = vmatpush1.msra.mxu0 0.0
        %1329 = vmatprep.subr.mxu0 0.0
        %1330 = vmatpush1.msra.mxu0 0.0
        %1331 = vmatprep.subr.mxu0 0.0
        %1332 = vmatpush1.msra.mxu0 0.0
        %1333 = vmatprep.subr.mxu0 0.0
        %1334 = vmatpush1.msra.mxu0 0.0
        %1335 = vmatprep.subr.mxu0 0.0
        %1336 = vmatpush1.msra.mxu0 0.0
        %1337 = vmatprep.subr.mxu0 0.0
        %1338 = vmatpush1.msra.mxu0 0.0
        %1339 = vmatprep.subr.mxu0 0.0
        %1340 = vmatpush1.msra.mxu0 0.0
        %1341 = vmatprep.subr.mxu0 0.0
        %1342 = vmatpush1.msra.mxu0 0.0
        %1343 = vmatprep.subr.mxu0 0.0
        %1344 = vmatpush1.msra.mxu0 0.0
        %1345 = vmatprep.subr.mxu0 0.0
        %1346 = vmatpush1.msra.mxu0 0.0
        %1347 = vmatprep.subr.mxu0 0.0
        %1348 = vmatpush1.msra.mxu0 0.0
        %1349 = vmatprep.subr.mxu0 0.0
        %1350 = vmatpush1.msra.mxu0 0.0
        %1351 = vmatprep.subr.mxu0 0.0
        %1352 = vmatpush1.msra.mxu0 0.0
        %1353 = vmatprep.subr.mxu0 0.0
        %1354 = vmatpush1.msra.mxu0 0.0
        %1355 = vmatprep.subr.mxu0 0.0
        %1356 = vmatpush1.msra.mxu0 0.0
        %1357 = vmatprep.subr.mxu0 0.0
        %1358 = vmatpush1.msra.mxu0 0.0
        %1359 = vmatprep.subr.mxu0 0.0
        %1360 = vmatpush1.msra.mxu0 0.0
        %1361 = vmatprep.mubr.f32.mxu0 0.0
        %1362 = vmatmul.mubr.f32.gmra.mrb[0].mxu0 %v1295
        %v1363 = vpop.f32.mrb[0].mxu0
        %v1364 = vadd.f32 0.0, %v1363
        %v1365 = vpop.f32.mrb[0].mxu0
        %1366 = vdwg.mxu0
        %v1367 = vadd.f32 %v1118, %v1364
        %1368 = vrot.lane.b32.xlu0 %v627, 104
        %v1369 = vpop.permute.xlu0 %1368
        %1370 = vrot.lane.b32.xlu0 %v627, 72
        %v1371 = vpop.permute.xlu0 %1370
        %v1372 = vsel %vm633, %v1369, 0
        %v1374 = vsel %vm633, %v1371, 0
        %1376 = vmatprep.subr.mxu0 0.0
        %1377 = vmatpush1.xpose.msra.mxu0 %v1374
        %1378 = vmatprep.subr.mxu0 0.0
        %1379 = vmatpush1.xpose.msra.mxu0 0.0
        %1380 = vmatprep.subr.mxu0 0.0
        %1381 = vmatpush1.xpose.msra.mxu0 0.0
        %1382 = vmatprep.subr.mxu0 0.0
        %1383 = vmatpush1.xpose.msra.mxu0 0.0
        %1384 = vmatprep.subr.mxu0 0.0
        %1385 = vmatpush1.xpose.msra.mxu0 0.0
        %1386 = vmatprep.subr.mxu0 0.0
        %1387 = vmatpush1.xpose.msra.mxu0 0.0
        %1388 = vmatprep.subr.mxu0 0.0
        %1389 = vmatpush1.xpose.msra.mxu0 0.0
        %1390 = vmatprep.subr.mxu0 0.0
        %1391 = vmatpush1.xpose.msra.mxu0 0.0
        %1392 = vmatprep.subr.mxu0 0.0
        %1393 = vmatpush1.xpose.msra.mxu0 0.0
        %1394 = vmatprep.subr.mxu0 0.0
        %1395 = vmatpush1.xpose.msra.mxu0 0.0
        %1396 = vmatprep.subr.mxu0 0.0
        %1397 = vmatpush1.xpose.msra.mxu0 0.0
        %1398 = vmatprep.subr.mxu0 0.0
        %1399 = vmatpush1.xpose.msra.mxu0 0.0
        %1400 = vmatprep.subr.mxu0 0.0
        %1401 = vmatpush1.xpose.msra.mxu0 0.0
        %1402 = vmatprep.subr.mxu0 0.0
        %1403 = vmatpush1.xpose.msra.mxu0 0.0
        %1404 = vmatprep.subr.mxu0 0.0
        %1405 = vmatpush1.xpose.msra.mxu0 0.0
        %1406 = vmatprep.subr.mxu0 0.0
        %1407 = vmatpush1.xpose.msra.mxu0 0.0
        %1408 = vmatprep.subr.mxu0 0.0
        %1409 = vmatpush1.xpose.msra.mxu0 0.0
        %1410 = vmatprep.subr.mxu0 0.0
        %1411 = vmatpush1.xpose.msra.mxu0 0.0
        %1412 = vmatprep.subr.mxu0 0.0
        %1413 = vmatpush1.xpose.msra.mxu0 0.0
        %1414 = vmatprep.subr.mxu0 0.0
        %1415 = vmatpush1.xpose.msra.mxu0 0.0
        %1416 = vmatprep.subr.mxu0 0.0
        %1417 = vmatpush1.xpose.msra.mxu0 0.0
        %1418 = vmatprep.subr.mxu0 0.0
        %1419 = vmatpush1.xpose.msra.mxu0 0.0
        %1420 = vmatprep.subr.mxu0 0.0
        %1421 = vmatpush1.xpose.msra.mxu0 0.0
        %1422 = vmatprep.subr.mxu0 0.0
        %1423 = vmatpush1.xpose.msra.mxu0 0.0
        %1424 = vmatprep.subr.mxu0 0.0
        %1425 = vmatpush1.xpose.msra.mxu0 0.0
        %1426 = vmatprep.subr.mxu0 0.0
        %1427 = vmatpush1.xpose.msra.mxu0 0.0
        %1428 = vmatprep.subr.mxu0 0.0
        %1429 = vmatpush1.xpose.msra.mxu0 0.0
        %1430 = vmatprep.subr.mxu0 0.0
        %1431 = vmatpush1.xpose.msra.mxu0 0.0
        %1432 = vmatprep.subr.mxu0 0.0
        %1433 = vmatpush1.xpose.msra.mxu0 0.0
        %1434 = vmatprep.subr.mxu0 0.0
        %1435 = vmatpush1.xpose.msra.mxu0 0.0
        %1436 = vmatprep.subr.mxu0 0.0
        %1437 = vmatpush1.xpose.msra.mxu0 0.0
        %1438 = vmatprep.subr.mxu0 0.0
        %1439 = vmatpush1.xpose.msra.mxu0 0.0
        %1440 = vmatprep.mubr.f32.mxu0 0.0
        %1441 = vmatmul.mubr.f32.gmra.mrb[0].mxu0 %v1372
        %v1442 = vpop.f32.mrb[0].mxu0
        %v1443 = vadd.f32 0.0, %v1442
        %v1444 = vpop.f32.mrb[0].mxu0
        %1445 = vdwg.mxu0
        %v1446 = vmul.f32 %v1443, 0.35355338
        %s1447 = scalar_lea.vmem %s479, 24 [#allocation7]
        %v1448 = vld [vmem:[%s1447] sm:$0xff]
        %v1449 = vadd.f32 %v1446, %v1448
        %v1450 = vsel %vm633, %v1449, -inf
        %1451 = vmax.xlane.f32.xlu0 %v1450
        %v1452 = vpop.xlane.xlu0 %1451
        %v1453 = vsub.f32 %v1449, %v1452
        %v1454 = vmul.f32 %v1453, 1.442695
        %v1455 = vpow.pop %v1454
        %v1456 = vsel %vm633, %v1455, 0.0
        %1457 = vadd.xlane.f32.xlu0 %v1456
        %v1458 = vpop.xlane.xlu0 %1457
        %v1459 = vrcp.pop %v1458
        %v1460 = vmul.f32 %v1458, %v1459
        %v1461 = vsub.f32 2.0, %v1460
        %v1462 = vmul.f32 %v1459, %v1461
        %v1463 = vmul.f32 %v1455, %v1462
        %1464 = vrot.lane.b32.xlu0 %v627, 40
        %v1465 = vpop.permute.xlu0 %1464
        %v1468 = vsel %vm633, %v1463, 0
        %1470 = vmatprep.subr.mxu0 0.0
        %1471 = vmatpush1.msra.mxu0 %v1465
        %1472 = vmatprep.subr.mxu0 0.0
        %1473 = vmatpush1.msra.mxu0 0.0
        %1474 = vmatprep.subr.mxu0 0.0
        %1475 = vmatpush1.msra.mxu0 0.0
        %1476 = vmatprep.subr.mxu0 0.0
        %1477 = vmatpush1.msra.mxu0 0.0
        %1478 = vmatprep.subr.mxu0 0.0
        %1479 = vmatpush1.msra.mxu0 0.0
        %1480 = vmatprep.subr.mxu0 0.0
        %1481 = vmatpush1.msra.mxu0 0.0
        %1482 = vmatprep.subr.mxu0 0.0
        %1483 = vmatpush1.msra.mxu0 0.0
        %1484 = vmatprep.subr.mxu0 0.0
        %1485 = vmatpush1.msra.mxu0 0.0
        %1486 = vmatprep.subr.mxu0 0.0
        %1487 = vmatpush1.msra.mxu0 0.0
        %1488 = vmatprep.subr.mxu0 0.0
        %1489 = vmatpush1.msra.mxu0 0.0
        %1490 = vmatprep.subr.mxu0 0.0
        %1491 = vmatpush1.msra.mxu0 0.0
        %1492 = vmatprep.subr.mxu0 0.0
        %1493 = vmatpush1.msra.mxu0 0.0
        %1494 = vmatprep.subr.mxu0 0.0
        %1495 = vmatpush1.msra.mxu0 0.0
        %1496 = vmatprep.subr.mxu0 0.0
        %1497 = vmatpush1.msra.mxu0 0.0
        %1498 = vmatprep.subr.mxu0 0.0
        %1499 = vmatpush1.msra.mxu0 0.0
        %1500 = vmatprep.subr.mxu0 0.0
        %1501 = vmatpush1.msra.mxu0 0.0
        %1502 = vmatprep.subr.mxu0 0.0
        %1503 = vmatpush1.msra.mxu0 0.0
        %1504 = vmatprep.subr.mxu0 0.0
        %1505 = vmatpush1.msra.mxu0 0.0
        %1506 = vmatprep.subr.mxu0 0.0
        %1507 = vmatpush1.msra.mxu0 0.0
        %1508 = vmatprep.subr.mxu0 0.0
        %1509 = vmatpush1.msra.mxu0 0.0
        %1510 = vmatprep.subr.mxu0 0.0
        %1511 = vmatpush1.msra.mxu0 0.0
        %1512 = vmatprep.subr.mxu0 0.0
        %1513 = vmatpush1.msra.mxu0 0.0
        %1514 = vmatprep.subr.mxu0 0.0
        %1515 = vmatpush1.msra.mxu0 0.0
        %1516 = vmatprep.subr.mxu0 0.0
        %1517 = vmatpush1.msra.mxu0 0.0
        %1518 = vmatprep.subr.mxu0 0.0
        %1519 = vmatpush1.msra.mxu0 0.0
        %1520 = vmatprep.subr.mxu0 0.0
        %1521 = vmatpush1.msra.mxu0 0.0
        %1522 = vmatprep.subr.mxu0 0.0
        %1523 = vmatpush1.msra.mxu0 0.0
        %1524 = vmatprep.subr.mxu0 0.0
        %1525 = vmatpush1.msra.mxu0 0.0
        %1526 = vmatprep.subr.mxu0 0.0
        %1527 = vmatpush1.msra.mxu0 0.0
        %1528 = vmatprep.subr.mxu0 0.0
        %1529 = vmatpush1.msra.mxu0 0.0
        %1530 = vmatprep.subr.mxu0 0.0
        %1531 = vmatpush1.msra.mxu0 0.0
        %1532 = vmatprep.subr.mxu0 0.0
        %1533 = vmatpush1.msra.mxu0 0.0
        %1534 = vmatprep.mubr.f32.mxu0 0.0
        %1535 = vmatmul.mubr.f32.gmra.mrb[0].mxu0 %v1468
        %v1536 = vpop.f32.mrb[0].mxu0
        %v1537 = vadd.f32 0.0, %v1536
        %v1538 = vpop.f32.mrb[0].mxu0
        %1539 = vdwg.mxu0
        %v1540 = vld [vmem:[#allocation10 + $0x18] sm:$0xff]
        %v1542 = vsel %vm633, %v1537, 0
        %1544 = vmatprep.subr.mxu0 0.0
        %1545 = vmatpush1.msra.mxu0 %v1540
        %1546 = vmatprep.subr.mxu0 0.0
        %1547 = vmatpush1.msra.mxu0 0.0
        %1548 = vmatprep.subr.mxu0 0.0
        %1549 = vmatpush1.msra.mxu0 0.0
        %1550 = vmatprep.subr.mxu0 0.0
        %1551 = vmatpush1.msra.mxu0 0.0
        %1552 = vmatprep.subr.mxu0 0.0
        %1553 = vmatpush1.msra.mxu0 0.0
        %1554 = vmatprep.subr.mxu0 0.0
        %1555 = vmatpush1.msra.mxu0 0.0
        %1556 = vmatprep.subr.mxu0 0.0
        %1557 = vmatpush1.msra.mxu0 0.0
        %1558 = vmatprep.subr.mxu0 0.0
        %1559 = vmatpush1.msra.mxu0 0.0
        %1560 = vmatprep.subr.mxu0 0.0
        %1561 = vmatpush1.msra.mxu0 0.0
        %1562 = vmatprep.subr.mxu0 0.0
        %1563 = vmatpush1.msra.mxu0 0.0
        %1564 = vmatprep.subr.mxu0 0.0
        %1565 = vmatpush1.msra.mxu0 0.0
        %1566 = vmatprep.subr.mxu0 0.0
        %1567 = vmatpush1.msra.mxu0 0.0
        %1568 = vmatprep.subr.mxu0 0.0
        %1569 = vmatpush1.msra.mxu0 0.0
        %1570 = vmatprep.subr.mxu0 0.0
        %1571 = vmatpush1.msra.mxu0 0.0
        %1572 = vmatprep.subr.mxu0 0.0
        %1573 = vmatpush1.msra.mxu0 0.0
        %1574 = vmatprep.subr.mxu0 0.0
        %1575 = vmatpush1.msra.mxu0 0.0
        %1576 = vmatprep.subr.mxu0 0.0
        %1577 = vmatpush1.msra.mxu0 0.0
        %1578 = vmatprep.subr.mxu0 0.0
        %1579 = vmatpush1.msra.mxu0 0.0
        %1580 = vmatprep.subr.mxu0 0.0
        %1581 = vmatpush1.msra.mxu0 0.0
        %1582 = vmatprep.subr.mxu0 0.0
        %1583 = vmatpush1.msra.mxu0 0.0
        %1584 = vmatprep.subr.mxu0 0.0
        %1585 = vmatpush1.msra.mxu0 0.0
        %1586 = vmatprep.subr.mxu0 0.0
        %1587 = vmatpush1.msra.mxu0 0.0
        %1588 = vmatprep.subr.mxu0 0.0
        %1589 = vmatpush1.msra.mxu0 0.0
        %1590 = vmatprep.subr.mxu0 0.0
        %1591 = vmatpush1.msra.mxu0 0.0
        %1592 = vmatprep.subr.mxu0 0.0
        %1593 = vmatpush1.msra.mxu0 0.0
        %1594 = vmatprep.subr.mxu0 0.0
        %1595 = vmatpush1.msra.mxu0 0.0
        %1596 = vmatprep.subr.mxu0 0.0
        %1597 = vmatpush1.msra.mxu0 0.0
        %1598 = vmatprep.subr.mxu0 0.0
        %1599 = vmatpush1.msra.mxu0 0.0
        %1600 = vmatprep.subr.mxu0 0.0
        %1601 = vmatpush1.msra.mxu0 0.0
        %1602 = vmatprep.subr.mxu0 0.0
        %1603 = vmatpush1.msra.mxu0 0.0
        %1604 = vmatprep.subr.mxu0 0.0
        %1605 = vmatpush1.msra.mxu0 0.0
        %1606 = vmatprep.subr.mxu0 0.0
        %1607 = vmatpush1.msra.mxu0 0.0
        %1608 = vmatprep.mubr.f32.mxu0 0.0
        %1609 = vmatmul.mubr.f32.gmra.mrb[0].mxu0 %v1542
        %v1610 = vpop.f32.mrb[0].mxu0
        %v1611 = vadd.f32 0.0, %v1610
        %v1612 = vpop.f32.mrb[0].mxu0
        %1613 = vdwg.mxu0
        %v1614 = vadd.f32 %v1367, %v1611
        %v1615 = vld [vmem:[%s6] sm:$0x1]
        %v1617 = vlaneseq
        %v1618 = vshrl.u32 %v1617, 7
        %v1619 = vsub.s32 0, %v1618
        %v1620 = vrot.slane %v1615, %v1619
        %v1622 = vadd.f32 %v1614, %v1620
        %v1623 = vmul.f32 %v1622, 0.1
        %v1624 = vadd.f32 %v544, %v1623
        %v1625 = vadd.f32 %v543, %v1622
        %v1626 = vld [vmem:[%s7] sm:$0x1]
        %v1627 = vld [vmem:[%s8] sm:$0x1]
        %v1628 = vsel %vm556, %v1625, 0.0
        %1629 = vadd.xlane.f32.xlu0 %v1628
        %v1630 = vpop.xlane.xlu0 %1629
        %v1631 = vrcp.pop 32.0
        %v1632 = vmul.f32 %v1630, %v1631
        %v1633 = vsub.f32 %v1625, %v1632
        %v1634 = vmul.f32 %v1633, %v1633
        %v1635 = vsel %vm556, %v1634, 0.0
        %1636 = vadd.xlane.f32.xlu0 %v1635
        %v1637 = vpop.xlane.xlu0 %1636
        %v1638 = vmul.f32 %v1637, %v1631
        %v1639 = vadd.f32 %v1638, 1e-05
        %v1640 = vrsqrt.pop %v1639
        %v1641 = vmul.f32 %v1633, %v1640
        %v1643 = vlaneseq
        %v1644 = vshrl.u32 %v1643, 7
        %v1645 = vsub.s32 0, %v1644
        %v1646 = vrot.slane %v1626, %v1645
        %v1648 = vmul.f32 %v1641, %v1646
        %v1650 = vlaneseq
        %v1651 = vshrl.u32 %v1650, 7
        %v1652 = vsub.s32 0, %v1651
        %v1653 = vrot.slane %v1627, %v1652
        %v1655 = vadd.f32 %v1648, %v1653
        %v1656 = vld [vmem:[%s9] sm:$0x1]
        %v1657 = vld [vmem:[%s10] sm:$0x1]
        %v1658 = vsel %vm556, %v1624, 0.0
        %1659 = vadd.xlane.f32.xlu0 %v1658
        %v1660 = vpop.xlane.xlu0 %1659
        %v1661 = vmul.f32 %v1660, %v1631
        %v1662 = vsub.f32 %v1624, %v1661
        %v1663 = vmul.f32 %v1662, %v1662
        %v1664 = vsel %vm556, %v1663, 0.0
        %1665 = vadd.xlane.f32.xlu0 %v1664
        %v1666 = vpop.xlane.xlu0 %1665
        %v1667 = vmul.f32 %v1666, %v1631
        %v1668 = vadd.f32 %v1667, 1e-05
        %v1669 = vrsqrt.pop %v1668
        %v1670 = vmul.f32 %v1662, %v1669
        %v1672 = vlaneseq
        %v1673 = vshrl.u32 %v1672, 7
        %v1674 = vsub.s32 0, %v1673
        %v1675 = vrot.slane %v1656, %v1674
        %v1677 = vmul.f32 %v1670, %v1675
        %v1679 = vlaneseq
        %v1680 = vshrl.u32 %v1679, 7
        %v1681 = vsub.s32 0, %v1680
        %v1682 = vrot.slane %v1657, %v1681
        %v1684 = vadd.f32 %v1677, %v1682
        %v1685 = vadd.f32 %v1655, %v1684
        %1686 = vst.msk [vmem:[%s535] sm:$0xff] %vm556, %v1685
        %1687 = vst.msk [vmem:[%s542] sm:$0xff] %vm556, %v1624
        %s1688 = sand.u32 %s291, 1
        %s1689 = scalar_lea.sflag [#allocation4], %s1688
        %s1690 = sand.u32 %s291, 1
        %s1691 = smul.addr %s1690, 8
        %s1692 = scalar_lea.vmem [#allocation11], %s1691
        %s1693 = sand.u32 %s317, 1
        %s1694 = scalar_lea.sflag [#allocation13], %s1693
        %s1695 = sand.u32 %s317, 1
        %s1696 = smul.addr %s1695, 8
        %s1697 = scalar_lea.vmem [#allocation12], %s1696
        // Predicated region
        $region85: #{tpu_custom_call.1} parent=63 // pred_check
          %p1698 = pneg %p301
        $region86: #{tpu_custom_call.1} parent=63 // pred_check_branch
          %1700 = sbr.rel (%p1698) target = $region88
        $region87: #{tpu_custom_call.1} parent=63 // pred_region
          %s1702 = ssub.s32 128, 128
          %1703 = vsyncadd %s1689, %s1702
          %s1704 = smul.addr %s37, 128
          %s1705 = scalar_lea.hbm %s11, %s1704
          %s1707 = sshll.u32 %s1692, 4
          %s1708 = int_to_ptr.vmem [resolvable:$true] %s1707
          %1710 = dma.vmem_to_hbm [thread:$0]  %s1708, 128, %s1705, %s1689
        $region88: #{tpu_custom_call.1} parent=63 // pred_fallthru
          _
        // Predicated region
        $region89: #{tpu_custom_call.1} parent=63 // pred_check
          %p1711 = pneg %p327
        $region90: #{tpu_custom_call.1} parent=63 // pred_check_branch
          %1713 = sbr.rel (%p1711) target = $region92
        $region91: #{tpu_custom_call.1} parent=63 // pred_region
          %s1715 = ssub.s32 128, 128
          %1716 = vsyncadd %s1694, %s1715
          %s1717 = smul.addr %s37, 128
          %s1718 = scalar_lea.hbm %s12, %s1717
          %s1720 = sshll.u32 %s1697, 4
          %s1721 = int_to_ptr.vmem [resolvable:$true] %s1720
          %1723 = dma.vmem_to_hbm [thread:$0]  %s1721, 128, %s1718, %s1694
        $region92: #{tpu_custom_call.1} parent=63 // pred_fallthru
          _
      $region64: #{tpu_custom_call.1} parent=5 // pred_fallthru
        _
      %p1724 = scmp.le.s32.totalorder 2, %s32
      // Predicated region
      $region93: #{tpu_custom_call.1} parent=5 // pred_check
        %p1725 = pneg %p1724
      $region94: #{tpu_custom_call.1} parent=5 // pred_check_branch
        %1727 = sbr.rel (%p1725) target = $region96
      $region95: #{tpu_custom_call.1} parent=5 // pred_region
        %s1728 = ssub.s32 %s32, 2
        // Predicated region
        $region97: #{tpu_custom_call.1} parent=95 // pred_check
          %p1729 = pneg %p307
        $region98: #{tpu_custom_call.1} parent=95 // pred_check_branch
          %1731 = sbr.rel (%p1729) target = $region100
        $region99: #{tpu_custom_call.1} parent=95 // pred_region
          %s1732 = sand.u32 %s292, 1
          %s1733 = scalar_lea.sflag [#allocation4], %s1732
          %s1734 = sand.u32 %s292, 1
          %s1735 = smul.addr %s1734, 8
          %s1736 = scalar_lea.vmem [#allocation11], %s1735
          %1737 = dma.done %s1733, 128
        $region100: #{tpu_custom_call.1} parent=95 // pred_fallthru
          _
        // Predicated region
        $region101: #{tpu_custom_call.1} parent=95 // pred_check
          %p1738 = pneg %p333
        $region102: #{tpu_custom_call.1} parent=95 // pred_check_branch
          %1740 = sbr.rel (%p1738) target = $region104
        $region103: #{tpu_custom_call.1} parent=95 // pred_region
          %s1741 = sand.u32 %s318, 1
          %s1742 = scalar_lea.sflag [#allocation13], %s1741
          %s1743 = sand.u32 %s318, 1
          %s1744 = smul.addr %s1743, 8
          %s1745 = scalar_lea.vmem [#allocation12], %s1744
          %1746 = dma.done %s1742, 128
        $region104: #{tpu_custom_call.1} parent=95 // pred_fallthru
          _
      $region96: #{tpu_custom_call.1} parent=5 // pred_fallthru
        _
    $region6: #{tpu_custom_call.1} parent=1 // loop_footer
      %s36 = sadd.s32 1, %s32
    $region7: #{tpu_custom_call.1} parent=1 // loop_footer_branch
      %31 = sbr.rel target = $region3
    $region8: #{tpu_custom_call.1} parent=1 // loop_exit
      _
    %1747 = vsyncpa [#allocation3], 1
    %s1748 = scalar_lea.sflag [#allocation3], 1
    %1749 = vsyncpa %s1748, 1
    %1750 = vsyncpa [#allocation6], 1
    %s1751 = scalar_lea.sflag [#allocation6], 1
    %1752 = vsyncpa %s1751, 1
    %1753 = vsyncpa [#allocation9], 1
    %1754 = vsyncpa [#allocation4], 1
    %s1755 = scalar_lea.sflag [#allocation4], 1
    %1756 = vsyncpa %s1755, 1
    %1757 = vsyncpa [#allocation13], 1
    %s1758 = scalar_lea.sflag [#allocation13], 1
    %1759 = vsyncpa %s1758, 1

</llo_original>
